<compile_context>
chip_gen: v7x
topology: tpu7x:2x2x1
jax: 0.10.0
libtpu: 0.0.40
codegen_flags: <defaults>
</compile_context>

<pallas_src>
import math
from functools import partial

import jax
import jax.numpy as jnp
from jax.experimental import pallas as pl
from jax.experimental.pallas import tpu as pltpu

# Module-level sizes fixed by the PyTorch module (ESGtransform hard-codes 5/9 widths,
# AggLSTM defaults input_size=5, hidden_size=5).
HID = 5
INP = 5
XW = 23                       # xs / xd feature width: [0:5] feat, [5:14] ESG, [14:23] esg

# ---------------------------------------------------------------------------
# Packed parameter-slab layout (rows; every sub-array starts at a multiple of 8, col 0).
# ---------------------------------------------------------------------------
PW = 4 * HID                  # slab width = 20 (widest sub-array: fused LSTM weights)
ROW_WQ1S = 0                  # (9, 5)
ROW_WQ2S = 16                 # (9, 5)
ROW_WQ1D = 32                 # (9, 5)
ROW_WQ2D = 48                 # (9, 5)
ROW_WK = 64                   # (5, 5)
ROW_WV = 72                   # (5, 5)
ROW_MISC = 80                 # row 80: ln_w(5)  row 81: ln_b(5)  row 82: [beta_s, beta_d]
ROW_WIH = 88                  # (5, 20)  fused input weights, gate order [i|f|g|o]
ROW_WHH = 96                  # (5, 20)  fused hidden weights
ROW_BIAS = 104                # (1, 20)  b_ih + b_hh
P_ROWS = 112


def pack_params(p):
    """One-time parameter packing into a single lane-dense f32 slab (init-time only)."""
    f32 = jnp.float32
    slab = jnp.zeros((P_ROWS, PW), f32)

    def put(sl, row, arr):
        arr = jnp.asarray(arr, f32)
        return sl.at[row:row + arr.shape[0], 0:arr.shape[1]].set(arr)

    slab = put(slab, ROW_WQ1S, p["beta_q11"].T)          # (9,5) : x_esg @ Wq1
    slab = put(slab, ROW_WQ2S, p["beta_q12"].T)
    slab = put(slab, ROW_WQ1D, p["beta_q21"].T)
    slab = put(slab, ROW_WQ2D, p["beta_q22"].T)
    slab = put(slab, ROW_WK, p["w_k"].T)                 # (5,5)
    slab = put(slab, ROW_WV, p["w_v"].T)
    slab = put(slab, ROW_MISC + 0, p["ln_w"].reshape(1, 5))
    slab = put(slab, ROW_MISC + 1, p["ln_b"].reshape(1, 5))
    slab = put(slab, ROW_MISC + 2,
               jnp.stack([p["beta_q10"][0], p["beta_q20"][0]]).reshape(1, 2))
    # torch LSTM weight_ih_l0 is (4H, I) with row blocks [i; f; g; o]; transposing gives
    # (I, 4H) with column blocks [i | f | g | o] -> one fused matmul per step.
    slab = put(slab, ROW_WIH, p["w_ih"].T)               # (I, 4H)
    slab = put(slab, ROW_WHH, p["w_hh"].T)               # (H, 4H)
    slab = put(slab, ROW_BIAS, (p["b_ih"] + p["b_hh"]).reshape(1, 4 * HID))
    return slab


# ---------------------------------------------------------------------------
# Fused kernel: ESGtransform (s and d) + merged one-hot gather + batched LSTM c_n.
# Static sizes are closed over; all slab reads are static ref slices (free).
# ---------------------------------------------------------------------------
def _make_kernel(n_s, n_d, d_off, L, R_pad):
    H = HID
    LR = L * R_pad
    NT = n_s + n_d
    inv_sqrt5 = 1.0 / math.sqrt(5.0)

    def kernel(idx_ref, p_ref, x_ref, c_out_ref):
        # ---- parameter reads (static slices of the packed slab) --------------------
        wq1s = p_ref[ROW_WQ1S:ROW_WQ1S + 9, 0:H]
        wq2s = p_ref[ROW_WQ2S:ROW_WQ2S + 9, 0:H]
        wq1d = p_ref[ROW_WQ1D:ROW_WQ1D + 9, 0:H]
        wq2d = p_ref[ROW_WQ2D:ROW_WQ2D + 9, 0:H]
        wk = p_ref[ROW_WK:ROW_WK + 5, 0:5]
        wv = p_ref[ROW_WV:ROW_WV + 5, 0:5]
        misc = p_ref[ROW_MISC:ROW_MISC + 3, 0:5]
        ln_w = misc[0:1, :]
        ln_b = misc[1:2, :]
        beta_s = misc[2:3, 0:1]
        beta_d = misc[2:3, 1:2]
        w_ih = p_ref[ROW_WIH:ROW_WIH + INP, 0:4 * H]     # (I, 4H)
        w_hh = p_ref[ROW_WHH:ROW_WHH + H, 0:4 * H]       # (H, 4H)
        bias = p_ref[ROW_BIAS:ROW_BIAS + 1, 0:4 * H]     # (1, 4H)

        def esg_transform(x, wq1, wq2, beta0):
            feat = x[:, 0:5]
            # torch: where(x <= 0, 1e-10, x) on the ESG / esg blocks
            x_ESG = jnp.where(x[:, 5:14] <= 0.0, 1e-10, x[:, 5:14])
            x_esg = jnp.where(x[:, 14:23] <= 0.0, 1e-10, x[:, 14:23])
            # LayerNorm(5), eps=1e-5, biased variance
            mu = jnp.mean(feat, axis=-1, keepdims=True)
            var = jnp.mean((feat - mu) ** 2, axis=-1, keepdims=True)
            xf = (feat - mu) * jax.lax.rsqrt(var + 1e-5) * ln_w + ln_b
            xk = jnp.dot(xf, wk, preferred_element_type=jnp.float32)
            xv = jnp.dot(xf, wv, preferred_element_type=jnp.float32)
            xq = (beta0
                  + jnp.dot(x_esg, wq1, preferred_element_type=jnp.float32)
                  + jnp.dot(x_ESG * x_esg, wq2, preferred_element_type=jnp.float32))
            scores = jnp.dot(xq, xk.T, preferred_element_type=jnp.float32) * inv_sqrt5
            # softmax_one, verbatim semantics of the torch reference:
            #   x -= max(x); e = exp(x); e / (1 + sum(e))   (exact division, not approx)
            m = jnp.max(scores, axis=1, keepdims=True)
            e = jnp.exp(scores - m)
            attn = e / (1.0 + jnp.sum(e, axis=1, keepdims=True))
            # args.ablation == False -> residual add of the layer-normed features
            return jnp.dot(attn, xv, preferred_element_type=jnp.float32) + xf

        s = esg_transform(x_ref[0:n_s, :], wq1s, wq2s, beta_s)                 # (n_s, 5)
        d = esg_transform(x_ref[d_off:d_off + n_d, :], wq1d, wq2d, beta_d)     # (n_d, 5)

        # ---- merged metapath gather via one one-hot matmul --------------------------
        # (d-row indices were offset by n_s in the wrapper; out-of-range indices would
        #  silently produce zero rows, whereas torch would raise -- inputs must be valid)
        table = jnp.concatenate([s, d], axis=0)                                # (NT, 5)
        idx = idx_ref[...]                                                     # (LR, 1) i32
        iota = jax.lax.broadcasted_iota(jnp.int32, (LR, NT), 1)
        oh = (idx == iota).astype(jnp.float32)                                 # (LR, NT)
        x_all = jnp.dot(oh, table, preferred_element_type=jnp.float32)         # (LR, I)

        # ---- hoisted fused input projection for all time steps at once --------------
        gx = jnp.dot(x_all, w_ih, preferred_element_type=jnp.float32) + bias   # (LR, 4H)

        # ---- batched LSTM recurrence (torch gate order i,f,g,o), fully unrolled -----
        h = jnp.zeros((R_pad, H), jnp.float32)
        c = jnp.zeros((R_pad, H), jnp.float32)
        for t in range(L):                                  # L tiny -> static unroll
            pre = gx[t * R_pad:(t + 1) * R_pad, :]          # sublane-aligned static slice
            if t > 0:                                       # h == 0 at t == 0
                pre = pre + jnp.dot(h, w_hh, preferred_element_type=jnp.float32)
            i_g = jax.nn.sigmoid(pre[:, 0:H])
            f_g = jax.nn.sigmoid(pre[:, H:2 * H])
            g_g = jnp.tanh(pre[:, 2 * H:3 * H])
            o_g = jax.nn.sigmoid(pre[:, 3 * H:4 * H])
            c = f_g * c + i_g * g_g
            h = o_g * jnp.tanh(c)

        c_out_ref[...] = c                                  # c_n, one (R_pad, H) slab

    return kernel


# ---------------------------------------------------------------------------
# Forward: per-call work is only idx packing, x-slab assembly and ONE pallas_call.
# ---------------------------------------------------------------------------
@jax.jit
def agg_lstm_forward(param_slab, xs, xd, metapath):
    f32 = jnp.float32
    n_s, n_d = xs.shape[0], xd.shape[0]
    A, B, L = metapath[0].shape
    AB = A * B
    R = 3 * AB
    R_pad = ((R + 7) // 8) * 8                 # 18 -> 24: aligned per-timestep slices
    LR = L * R_pad

    # x slab: xs at row 0, xd at the next multiple-of-8 row offset.
    d_off = ((n_s + 7) // 8) * 8
    parts = [xs.astype(f32)]
    if d_off > n_s:
        parts.append(jnp.zeros((d_off - n_s, XW), f32))
    parts.append(xd.astype(f32))
    x_slab = jnp.concatenate(parts, axis=0)                               # (d_off+n_d, 23)

    # Batched gather indices for groups [ps(from s), pd(from d), id(from d)] + pad rows.
    # The torch `is_vect` pass is dead (overwritten) and is dropped; d indices are offset
    # by n_s to address the concatenated [s; d] table inside the kernel.
    idx_parts = [
        jnp.asarray(metapath[0], jnp.int32).reshape(AB, L),
        jnp.asarray(metapath[1], jnp.int32).reshape(AB, L) + n_s,
        jnp.asarray(metapath[3], jnp.int32).reshape(AB, L) + n_s,
    ]
    if R_pad > R:
        idx_parts.append(jnp.zeros((R_pad - R, L), jnp.int32))            # dummy pad rows
    idx = jnp.transpose(jnp.concatenate(idx_parts, axis=0), (1, 0))       # time-major
    idx = idx.reshape(LR, 1)

    kernel = _make_kernel(n_s, n_d, d_off, L, R_pad)
    c_all = pl.pallas_call(
        kernel,
        out_shape=jax.ShapeDtypeStruct((R_pad, HID), jnp.float32),
        in_specs=[pl.BlockSpec(memory_space=pltpu.MemorySpace.VMEM)] * 3,
        out_specs=pl.BlockSpec(memory_space=pltpu.MemorySpace.VMEM),
    )(idx, param_slab, x_slab)

    out_ps = c_all[0:AB].reshape(A, B, HID)
    out_pd = c_all[AB:2 * AB].reshape(A, B, HID)
    out_id = c_all[2 * AB:3 * AB].reshape(A, B, HID)
    # torch returns (out_ps, out_is, out_pd, out_is) where out_is was overwritten by the
    # id pass -> positions 2 and 4 are both id-derived.
    return out_ps, out_id, out_pd, out_id


# ---------------------------------------------------------------------------
# Parameter construction (deterministic, mimicking torch __init__ / init_weights).
# ---------------------------------------------------------------------------
def xavier_normal(key, shape):
    fan_out, fan_in = shape
    std = math.sqrt(2.0 / (fan_in + fan_out))
    return std * jax.random.normal(key, shape, dtype=jnp.float32)


def make_params(key, input_size=INP, hidden_size=HID):
    ks = jax.random.split(key, 12)
    p = {}
    p["beta_q10"] = jnp.zeros((1,), jnp.float32)         # nn.Parameter(zeros)
    p["beta_q20"] = jnp.zeros((1,), jnp.float32)
    p["beta_q11"] = xavier_normal(ks[0], (5, 9))
    p["beta_q12"] = xavier_normal(ks[1], (5, 9))
    p["beta_q21"] = xavier_normal(ks[2], (5, 9))
    p["beta_q22"] = xavier_normal(ks[3], (5, 9))
    p["w_k"] = xavier_normal(ks[4], (5, 5))
    p["w_v"] = xavier_normal(ks[5], (5, 5))
    p["ln_w"] = jnp.ones((5,), jnp.float32)              # LayerNorm defaults
    p["ln_b"] = jnp.zeros((5,), jnp.float32)
    k = 1.0 / math.sqrt(hidden_size)                     # torch LSTM default init
    p["w_ih"] = jax.random.uniform(ks[6], (4 * hidden_size, input_size), jnp.float32, -k, k)
    p["w_hh"] = jax.random.uniform(ks[7], (4 * hidden_size, hidden_size), jnp.float32, -k, k)
    p["b_ih"] = jax.random.uniform(ks[8], (4 * hidden_size,), jnp.float32, -k, k)
    p["b_hh"] = jax.random.uniform(ks[9], (4 * hidden_size,), jnp.float32, -k, k)
    return p


# ---------------------------------------------------------------------------
# Pure-JAX reference (mirrors the torch module) for a numerical sanity check.
# ---------------------------------------------------------------------------
def _reference_forward(params, xs, xd, metapath):
    p = params

    def softmax_one(x):
        x = x - jnp.max(x, axis=1, keepdims=True)
        e = jnp.exp(x)
        return e / (1.0 + jnp.sum(e, axis=1, keepdims=True))

    def transform(x, wq1, wq2, beta0):
        x_ESG = jnp.where(x[:, 5:14] <= 0, 1e-10, x[:, 5:14])
        x_esg = jnp.where(x[:, 14:23] <= 0, 1e-10, x[:, 14:23])
        feat = x[:, 0:5]
        mu = feat.mean(-1, keepdims=True)
        var = ((feat - mu) ** 2).mean(-1, keepdims=True)
        xf = (feat - mu) / jnp.sqrt(var + 1e-5) * p["ln_w"] + p["ln_b"]
        xk = xf @ p["w_k"].T
        xv = xf @ p["w_v"].T
        xq = beta0 + x_esg @ wq1.T + (x_ESG * x_esg) @ wq2.T
        attn = softmax_one(xq @ xk.T / math.sqrt(5.0))
        return attn @ xv + xf

    s = transform(xs, p["beta_q11"], p["beta_q12"], p["beta_q10"])
    d = transform(xd, p["beta_q21"], p["beta_q22"], p["beta_q20"])

    def lstm_cn(seq):  # (N, L, I) -> c_n (N, H)
        H = p["w_hh"].shape[1]
        b = p["b_ih"] + p["b_hh"]
        h = jnp.zeros((seq.shape[0], H), jnp.float32)
        c = jnp.zeros_like(h)
        for t in range(seq.shape[1]):
            g = seq[:, t] @ p["w_ih"].T + h @ p["w_hh"].T + b
            i = jax.nn.sigmoid(g[:, 0:H])
            f = jax.nn.sigmoid(g[:, H:2 * H])
            gg = jnp.tanh(g[:, 2 * H:3 * H])
            o = jax.nn.sigmoid(g[:, 3 * H:4 * H])
            c = f * c + i * gg
            h = o * jnp.tanh(c)
        return c

    A, B, L = metapath[0].shape
    ps = jnp.take(s, metapath[0].reshape(-1), axis=0).reshape(A * B, L, -1)
    pd_ = jnp.take(d, metapath[1].reshape(-1), axis=0).reshape(A * B, L, -1)
    id_ = jnp.take(d, metapath[3].reshape(-1), axis=0).reshape(A * B, L, -1)
    out_ps = lstm_cn(ps).reshape(A, B, -1)
    out_pd = lstm_cn(pd_).reshape(A, B, -1)
    out_id = lstm_cn(id_).reshape(A, B, -1)
    return out_ps, out_id, out_pd, out_id


if __name__ == "__main__":
    key = jax.random.PRNGKey(0)
    k_param, k_xs, k_xd, k_m0, k_m1, k_m2, k_m3 = jax.random.split(key, 7)

    params = make_params(k_param)
    param_slab = jax.block_until_ready(pack_params(params))   # one-time init-side packing

    N_S, N_D = 8, 8                       # number of s / d entities (rows of xs / xd)
    xs = jax.random.normal(k_xs, (N_S, XW), dtype=jnp.float32)
    xd = jax.random.normal(k_xd, (N_D, XW), dtype=jnp.float32)

    # metapath[i]: index tensors of shape (A, B, L) into s (for 0,2) / d (for 1,3)
    A, B, L = 2, 3, 4
    metapath = (
        jax.random.randint(k_m0, (A, B, L), 0, N_S),
        jax.random.randint(k_m1, (A, B, L), 0, N_D),
        jax.random.randint(k_m2, (A, B, L), 0, N_S),
        jax.random.randint(k_m3, (A, B, L), 0, N_D),
    )

    outs = jax.block_until_ready(agg_lstm_forward(param_slab, xs, xd, metapath))
    refs = jax.block_until_ready(_reference_forward(params, xs, xd, metapath))

    expected = [(A, B, HID)] * 4
    assert [tuple(o.shape) for o in outs] == expected, [o.shape for o in outs]
    for o, r in zip(outs, refs):
        assert bool(jnp.all(jnp.isfinite(o)))
        err = float(jnp.max(jnp.abs(o - r)))
        assert err < 1e-3, err            # exact softmax_one reciprocal -> tight tolerance
    print("KERNEL_OK")
</pallas_src>

<mosaic_0001>
module attributes {stable_mosaic.version = 11 : i64} {
  func.func @kernel(%arg0: memref<96x1xi32, #tpu.memory_space<vmem>>, %arg1: memref<112x20xf32, #tpu.memory_space<vmem>>, %arg2: memref<16x23xf32, #tpu.memory_space<vmem>>, %arg3: memref<24x5xf32, #tpu.memory_space<vmem>>) attributes {dimension_semantics = [], scalar_prefetch = 0 : i64, scratch_operands = 0 : i64, tpu.core_type = #tpu.core_type<tc>} {
    %c0 = arith.constant 0 : index
    %c0_0 = arith.constant 0 : index
    %0 = vector.load %arg1[%c0, %c0_0] : memref<112x20xf32, #tpu.memory_space<vmem>>, vector<9x5xf32>
    %c16 = arith.constant 16 : index
    %c0_1 = arith.constant 0 : index
    %1 = vector.load %arg1[%c16, %c0_1] : memref<112x20xf32, #tpu.memory_space<vmem>>, vector<9x5xf32>
    %c32 = arith.constant 32 : index
    %c0_2 = arith.constant 0 : index
    %2 = vector.load %arg1[%c32, %c0_2] : memref<112x20xf32, #tpu.memory_space<vmem>>, vector<9x5xf32>
    %c48 = arith.constant 48 : index
    %c0_3 = arith.constant 0 : index
    %3 = vector.load %arg1[%c48, %c0_3] : memref<112x20xf32, #tpu.memory_space<vmem>>, vector<9x5xf32>
    %c64 = arith.constant 64 : index
    %c0_4 = arith.constant 0 : index
    %4 = vector.load %arg1[%c64, %c0_4] : memref<112x20xf32, #tpu.memory_space<vmem>>, vector<5x5xf32>
    %c72 = arith.constant 72 : index
    %c0_5 = arith.constant 0 : index
    %5 = vector.load %arg1[%c72, %c0_5] : memref<112x20xf32, #tpu.memory_space<vmem>>, vector<5x5xf32>
    %c80 = arith.constant 80 : index
    %c0_6 = arith.constant 0 : index
    %6 = vector.load %arg1[%c80, %c0_6] : memref<112x20xf32, #tpu.memory_space<vmem>>, vector<3x5xf32>
    %7 = vector.extract_strided_slice %6 {offsets = [0, 0], sizes = [1, 5], strides = [1, 1]} : vector<3x5xf32> to vector<1x5xf32>
    %8 = vector.extract_strided_slice %6 {offsets = [1, 0], sizes = [1, 5], strides = [1, 1]} : vector<3x5xf32> to vector<1x5xf32>
    %9 = vector.extract_strided_slice %6 {offsets = [2, 0], sizes = [1, 1], strides = [1, 1]} : vector<3x5xf32> to vector<1x1xf32>
    %10 = vector.extract_strided_slice %6 {offsets = [2, 1], sizes = [1, 1], strides = [1, 1]} : vector<3x5xf32> to vector<1x1xf32>
    %c88 = arith.constant 88 : index
    %c0_7 = arith.constant 0 : index
    %11 = vector.load %arg1[%c88, %c0_7] : memref<112x20xf32, #tpu.memory_space<vmem>>, vector<5x20xf32>
    %c96 = arith.constant 96 : index
    %c0_8 = arith.constant 0 : index
    %12 = vector.load %arg1[%c96, %c0_8] : memref<112x20xf32, #tpu.memory_space<vmem>>, vector<5x20xf32>
    %c104 = arith.constant 104 : index
    %c0_9 = arith.constant 0 : index
    %13 = vector.load %arg1[%c104, %c0_9] : memref<112x20xf32, #tpu.memory_space<vmem>>, vector<1x20xf32>
    %c0_10 = arith.constant 0 : index
    %c0_11 = arith.constant 0 : index
    %14 = vector.load %arg2[%c0_10, %c0_11] : memref<16x23xf32, #tpu.memory_space<vmem>>, vector<8x23xf32>
    %15 = vector.extract_strided_slice %14 {offsets = [0, 0], sizes = [8, 5], strides = [1, 1]} : vector<8x23xf32> to vector<8x5xf32>
    %16 = vector.extract_strided_slice %14 {offsets = [0, 5], sizes = [8, 9], strides = [1, 1]} : vector<8x23xf32> to vector<8x9xf32>
    %cst = arith.constant 0.000000e+00 : f32
    %17 = vector.broadcast %cst : f32 to vector<8x9xf32>
    %18 = arith.cmpf ole, %16, %17 : vector<8x9xf32>
    %19 = vector.extract_strided_slice %14 {offsets = [0, 5], sizes = [8, 9], strides = [1, 1]} : vector<8x23xf32> to vector<8x9xf32>
    %cst_12 = arith.constant 1.000000e-10 : f32
    %20 = vector.broadcast %cst_12 : f32 to vector<8x9xf32>
    %21 = arith.select %18, %20, %19 : vector<8x9xi1>, vector<8x9xf32>
    %22 = vector.extract_strided_slice %14 {offsets = [0, 14], sizes = [8, 9], strides = [1, 1]} : vector<8x23xf32> to vector<8x9xf32>
    %cst_13 = arith.constant 0.000000e+00 : f32
    %23 = vector.broadcast %cst_13 : f32 to vector<8x9xf32>
    %24 = arith.cmpf ole, %22, %23 : vector<8x9xf32>
    %25 = vector.extract_strided_slice %14 {offsets = [0, 14], sizes = [8, 9], strides = [1, 1]} : vector<8x23xf32> to vector<8x9xf32>
    %cst_14 = arith.constant 1.000000e-10 : f32
    %26 = vector.broadcast %cst_14 : f32 to vector<8x9xf32>
    %27 = arith.select %24, %26, %25 : vector<8x9xi1>, vector<8x9xf32>
    %cst_15 = arith.constant dense<0.000000e+00> : vector<8xf32>
    %28 = vector.multi_reduction <add>, %15, %cst_15 [1] : vector<8x5xf32> to vector<8xf32>
    %29 = vector.shape_cast %28 : vector<8xf32> to vector<8x1xf32>
    %cst_16 = arith.constant 5.000000e+00 : f32
    %30 = vector.broadcast %cst_16 : f32 to vector<8x1xf32>
    %31 = arith.divf %29, %30 : vector<8x1xf32>
    %32 = vector.broadcast %31 : vector<8x1xf32> to vector<8x5xf32>
    %33 = arith.subf %15, %32 : vector<8x5xf32>
    %34 = arith.mulf %33, %33 : vector<8x5xf32>
    %cst_17 = arith.constant dense<0.000000e+00> : vector<8xf32>
    %35 = vector.multi_reduction <add>, %34, %cst_17 [1] : vector<8x5xf32> to vector<8xf32>
    %36 = vector.shape_cast %35 : vector<8xf32> to vector<8x1xf32>
    %cst_18 = arith.constant 5.000000e+00 : f32
    %37 = vector.broadcast %cst_18 : f32 to vector<8x1xf32>
    %38 = arith.divf %36, %37 : vector<8x1xf32>
    %39 = vector.broadcast %31 : vector<8x1xf32> to vector<8x5xf32>
    %40 = arith.subf %15, %39 : vector<8x5xf32>
    %cst_19 = arith.constant 9.99999974E-6 : f32
    %41 = vector.broadcast %cst_19 : f32 to vector<8x1xf32>
    %42 = arith.addf %38, %41 : vector<8x1xf32>
    %43 = math.rsqrt %42 : vector<8x1xf32>
    %44 = vector.broadcast %43 : vector<8x1xf32> to vector<8x5xf32>
    %45 = arith.mulf %40, %44 : vector<8x5xf32>
    %46 = vector.broadcast %7 : vector<1x5xf32> to vector<8x5xf32>
    %47 = arith.mulf %45, %46 : vector<8x5xf32>
    %48 = vector.broadcast %8 : vector<1x5xf32> to vector<8x5xf32>
    %49 = arith.addf %47, %48 : vector<8x5xf32>
    %cst_20 = arith.constant dense<0.000000e+00> : vector<8x5xf32>
    %50 = tpu.matmul %49, %4, %cst_20 {dimension_numbers = #tpu.dot_dimension_numbers<[1], [0], [0], [1], [0, 0, 1, 1], [], []>} : vector<8x5xf32>, vector<5x5xf32>, vector<8x5xf32> -> vector<8x5xf32>
    %cst_21 = arith.constant dense<0.000000e+00> : vector<8x5xf32>
    %51 = tpu.matmul %49, %5, %cst_21 {dimension_numbers = #tpu.dot_dimension_numbers<[1], [0], [0], [1], [0, 0, 1, 1], [], []>} : vector<8x5xf32>, vector<5x5xf32>, vector<8x5xf32> -> vector<8x5xf32>
    %cst_22 = arith.constant dense<0.000000e+00> : vector<8x5xf32>
    %52 = tpu.matmul %27, %0, %cst_22 {dimension_numbers = #tpu.dot_dimension_numbers<[1], [0], [0], [1], [0, 0, 1, 1], [], []>} : vector<8x9xf32>, vector<9x5xf32>, vector<8x5xf32> -> vector<8x5xf32>
    %53 = vector.broadcast %9 : vector<1x1xf32> to vector<8x5xf32>
    %54 = arith.addf %53, %52 : vector<8x5xf32>
    %55 = arith.mulf %21, %27 : vector<8x9xf32>
    %cst_23 = arith.constant dense<0.000000e+00> : vector<8x5xf32>
    %56 = tpu.matmul %55, %1, %cst_23 {dimension_numbers = #tpu.dot_dimension_numbers<[1], [0], [0], [1], [0, 0, 1, 1], [], []>} : vector<8x9xf32>, vector<9x5xf32>, vector<8x5xf32> -> vector<8x5xf32>
    %57 = arith.addf %54, %56 : vector<8x5xf32>
    %58 = tpu.transpose %50, [1, 0] : vector<8x5xf32> -> vector<5x8xf32>
    %cst_24 = arith.constant dense<0.000000e+00> : vector<8x8xf32>
    %59 = tpu.matmul %57, %58, %cst_24 {dimension_numbers = #tpu.dot_dimension_numbers<[1], [0], [0], [1], [0, 0, 1, 1], [], []>} : vector<8x5xf32>, vector<5x8xf32>, vector<8x8xf32> -> vector<8x8xf32>
    %cst_25 = arith.constant 0.44721359 : f32
    %60 = vector.broadcast %cst_25 : f32 to vector<8x8xf32>
    %61 = arith.mulf %59, %60 : vector<8x8xf32>
    %cst_26 = arith.constant dense<0xFF800000> : vector<8xf32>
    %62 = vector.multi_reduction <maximumf>, %61, %cst_26 [1] : vector<8x8xf32> to vector<8xf32>
    %63 = vector.shape_cast %62 : vector<8xf32> to vector<8x1xf32>
    %64 = vector.broadcast %63 : vector<8x1xf32> to vector<8x8xf32>
    %65 = arith.subf %61, %64 : vector<8x8xf32>
    %66 = math.exp %65 : vector<8x8xf32>
    %cst_27 = arith.constant dense<0.000000e+00> : vector<8xf32>
    %67 = vector.multi_reduction <add>, %66, %cst_27 [1] : vector<8x8xf32> to vector<8xf32>
    %68 = vector.shape_cast %67 : vector<8xf32> to vector<8x1xf32>
    %cst_28 = arith.constant 1.000000e+00 : f32
    %69 = vector.broadcast %cst_28 : f32 to vector<8x1xf32>
    %70 = arith.addf %69, %68 : vector<8x1xf32>
    %71 = vector.broadcast %70 : vector<8x1xf32> to vector<8x8xf32>
    %72 = arith.divf %66, %71 : vector<8x8xf32>
    %cst_29 = arith.constant dense<0.000000e+00> : vector<8x5xf32>
    %73 = tpu.matmul %72, %51, %cst_29 {dimension_numbers = #tpu.dot_dimension_numbers<[1], [0], [0], [1], [0, 0, 1, 1], [], []>} : vector<8x8xf32>, vector<8x5xf32>, vector<8x5xf32> -> vector<8x5xf32>
    %74 = arith.addf %73, %49 : vector<8x5xf32>
    %c8 = arith.constant 8 : index
    %c0_30 = arith.constant 0 : index
    %75 = vector.load %arg2[%c8, %c0_30] : memref<16x23xf32, #tpu.memory_space<vmem>>, vector<8x23xf32>
    %76 = vector.extract_strided_slice %75 {offsets = [0, 0], sizes = [8, 5], strides = [1, 1]} : vector<8x23xf32> to vector<8x5xf32>
    %77 = vector.extract_strided_slice %75 {offsets = [0, 5], sizes = [8, 9], strides = [1, 1]} : vector<8x23xf32> to vector<8x9xf32>
    %cst_31 = arith.constant 0.000000e+00 : f32
    %78 = vector.broadcast %cst_31 : f32 to vector<8x9xf32>
    %79 = arith.cmpf ole, %77, %78 : vector<8x9xf32>
    %80 = vector.extract_strided_slice %75 {offsets = [0, 5], sizes = [8, 9], strides = [1, 1]} : vector<8x23xf32> to vector<8x9xf32>
    %cst_32 = arith.constant 1.000000e-10 : f32
    %81 = vector.broadcast %cst_32 : f32 to vector<8x9xf32>
    %82 = arith.select %79, %81, %80 : vector<8x9xi1>, vector<8x9xf32>
    %83 = vector.extract_strided_slice %75 {offsets = [0, 14], sizes = [8, 9], strides = [1, 1]} : vector<8x23xf32> to vector<8x9xf32>
    %cst_33 = arith.constant 0.000000e+00 : f32
    %84 = vector.broadcast %cst_33 : f32 to vector<8x9xf32>
    %85 = arith.cmpf ole, %83, %84 : vector<8x9xf32>
    %86 = vector.extract_strided_slice %75 {offsets = [0, 14], sizes = [8, 9], strides = [1, 1]} : vector<8x23xf32> to vector<8x9xf32>
    %cst_34 = arith.constant 1.000000e-10 : f32
    %87 = vector.broadcast %cst_34 : f32 to vector<8x9xf32>
    %88 = arith.select %85, %87, %86 : vector<8x9xi1>, vector<8x9xf32>
    %cst_35 = arith.constant dense<0.000000e+00> : vector<8xf32>
    %89 = vector.multi_reduction <add>, %76, %cst_35 [1] : vector<8x5xf32> to vector<8xf32>
    %90 = vector.shape_cast %89 : vector<8xf32> to vector<8x1xf32>
    %cst_36 = arith.constant 5.000000e+00 : f32
    %91 = vector.broadcast %cst_36 : f32 to vector<8x1xf32>
    %92 = arith.divf %90, %91 : vector<8x1xf32>
    %93 = vector.broadcast %92 : vector<8x1xf32> to vector<8x5xf32>
    %94 = arith.subf %76, %93 : vector<8x5xf32>
    %95 = arith.mulf %94, %94 : vector<8x5xf32>
    %cst_37 = arith.constant dense<0.000000e+00> : vector<8xf32>
    %96 = vector.multi_reduction <add>, %95, %cst_37 [1] : vector<8x5xf32> to vector<8xf32>
    %97 = vector.shape_cast %96 : vector<8xf32> to vector<8x1xf32>
    %cst_38 = arith.constant 5.000000e+00 : f32
    %98 = vector.broadcast %cst_38 : f32 to vector<8x1xf32>
    %99 = arith.divf %97, %98 : vector<8x1xf32>
    %100 = vector.broadcast %92 : vector<8x1xf32> to vector<8x5xf32>
    %101 = arith.subf %76, %100 : vector<8x5xf32>
    %cst_39 = arith.constant 9.99999974E-6 : f32
    %102 = vector.broadcast %cst_39 : f32 to vector<8x1xf32>
    %103 = arith.addf %99, %102 : vector<8x1xf32>
    %104 = math.rsqrt %103 : vector<8x1xf32>
    %105 = vector.broadcast %104 : vector<8x1xf32> to vector<8x5xf32>
    %106 = arith.mulf %101, %105 : vector<8x5xf32>
    %107 = vector.broadcast %7 : vector<1x5xf32> to vector<8x5xf32>
    %108 = arith.mulf %106, %107 : vector<8x5xf32>
    %109 = vector.broadcast %8 : vector<1x5xf32> to vector<8x5xf32>
    %110 = arith.addf %108, %109 : vector<8x5xf32>
    %cst_40 = arith.constant dense<0.000000e+00> : vector<8x5xf32>
    %111 = tpu.matmul %110, %4, %cst_40 {dimension_numbers = #tpu.dot_dimension_numbers<[1], [0], [0], [1], [0, 0, 1, 1], [], []>} : vector<8x5xf32>, vector<5x5xf32>, vector<8x5xf32> -> vector<8x5xf32>
    %cst_41 = arith.constant dense<0.000000e+00> : vector<8x5xf32>
    %112 = tpu.matmul %110, %5, %cst_41 {dimension_numbers = #tpu.dot_dimension_numbers<[1], [0], [0], [1], [0, 0, 1, 1], [], []>} : vector<8x5xf32>, vector<5x5xf32>, vector<8x5xf32> -> vector<8x5xf32>
    %cst_42 = arith.constant dense<0.000000e+00> : vector<8x5xf32>
    %113 = tpu.matmul %88, %2, %cst_42 {dimension_numbers = #tpu.dot_dimension_numbers<[1], [0], [0], [1], [0, 0, 1, 1], [], []>} : vector<8x9xf32>, vector<9x5xf32>, vector<8x5xf32> -> vector<8x5xf32>
    %114 = vector.broadcast %10 : vector<1x1xf32> to vector<8x5xf32>
    %115 = arith.addf %114, %113 : vector<8x5xf32>
    %116 = arith.mulf %82, %88 : vector<8x9xf32>
    %cst_43 = arith.constant dense<0.000000e+00> : vector<8x5xf32>
    %117 = tpu.matmul %116, %3, %cst_43 {dimension_numbers = #tpu.dot_dimension_numbers<[1], [0], [0], [1], [0, 0, 1, 1], [], []>} : vector<8x9xf32>, vector<9x5xf32>, vector<8x5xf32> -> vector<8x5xf32>
    %118 = arith.addf %115, %117 : vector<8x5xf32>
    %119 = tpu.transpose %111, [1, 0] : vector<8x5xf32> -> vector<5x8xf32>
    %cst_44 = arith.constant dense<0.000000e+00> : vector<8x8xf32>
    %120 = tpu.matmul %118, %119, %cst_44 {dimension_numbers = #tpu.dot_dimension_numbers<[1], [0], [0], [1], [0, 0, 1, 1], [], []>} : vector<8x5xf32>, vector<5x8xf32>, vector<8x8xf32> -> vector<8x8xf32>
    %cst_45 = arith.constant 0.44721359 : f32
    %121 = vector.broadcast %cst_45 : f32 to vector<8x8xf32>
    %122 = arith.mulf %120, %121 : vector<8x8xf32>
    %cst_46 = arith.constant dense<0xFF800000> : vector<8xf32>
    %123 = vector.multi_reduction <maximumf>, %122, %cst_46 [1] : vector<8x8xf32> to vector<8xf32>
    %124 = vector.shape_cast %123 : vector<8xf32> to vector<8x1xf32>
    %125 = vector.broadcast %124 : vector<8x1xf32> to vector<8x8xf32>
    %126 = arith.subf %122, %125 : vector<8x8xf32>
    %127 = math.exp %126 : vector<8x8xf32>
    %cst_47 = arith.constant dense<0.000000e+00> : vector<8xf32>
    %128 = vector.multi_reduction <add>, %127, %cst_47 [1] : vector<8x8xf32> to vector<8xf32>
    %129 = vector.shape_cast %128 : vector<8xf32> to vector<8x1xf32>
    %cst_48 = arith.constant 1.000000e+00 : f32
    %130 = vector.broadcast %cst_48 : f32 to vector<8x1xf32>
    %131 = arith.addf %130, %129 : vector<8x1xf32>
    %132 = vector.broadcast %131 : vector<8x1xf32> to vector<8x8xf32>
    %133 = arith.divf %127, %132 : vector<8x8xf32>
    %cst_49 = arith.constant dense<0.000000e+00> : vector<8x5xf32>
    %134 = tpu.matmul %133, %112, %cst_49 {dimension_numbers = #tpu.dot_dimension_numbers<[1], [0], [0], [1], [0, 0, 1, 1], [], []>} : vector<8x8xf32>, vector<8x5xf32>, vector<8x5xf32> -> vector<8x5xf32>
    %135 = arith.addf %134, %110 : vector<8x5xf32>
    %136 = tpu.concatenate %74, %135 in 0 : vector<8x5xf32>, vector<8x5xf32> -> vector<16x5xf32>
    %c0_50 = arith.constant 0 : index
    %c0_51 = arith.constant 0 : index
    %137 = vector.load %arg0[%c0_50, %c0_51] : memref<96x1xi32, #tpu.memory_space<vmem>>, vector<96x1xi32>
    %138 = tpu.iota {dimensions = array<i32: 1>} : vector<96x16xi32>
    %139 = vector.broadcast %137 : vector<96x1xi32> to vector<96x16xi32>
    %140 = arith.cmpi eq, %139, %138 : vector<96x16xi32>
    %141 = arith.extui %140 : vector<96x16xi1> to vector<96x16xi32>
    %142 = arith.sitofp %141 : vector<96x16xi32> to vector<96x16xf32>
    %cst_52 = arith.constant dense<0.000000e+00> : vector<96x5xf32>
    %143 = tpu.matmul %142, %136, %cst_52 {dimension_numbers = #tpu.dot_dimension_numbers<[1], [0], [0], [1], [0, 0, 1, 1], [], []>} : vector<96x16xf32>, vector<16x5xf32>, vector<96x5xf32> -> vector<96x5xf32>
    %cst_53 = arith.constant dense<0.000000e+00> : vector<96x20xf32>
    %144 = tpu.matmul %143, %11, %cst_53 {dimension_numbers = #tpu.dot_dimension_numbers<[1], [0], [0], [1], [0, 0, 1, 1], [], []>} : vector<96x5xf32>, vector<5x20xf32>, vector<96x20xf32> -> vector<96x20xf32>
    %145 = vector.broadcast %13 : vector<1x20xf32> to vector<96x20xf32>
    %146 = arith.addf %144, %145 : vector<96x20xf32>
    %cst_54 = arith.constant 0.000000e+00 : f32
    %147 = vector.broadcast %cst_54 : f32 to vector<24x5xf32>
    %148 = vector.extract_strided_slice %146 {offsets = [0, 0], sizes = [24, 20], strides = [1, 1]} : vector<96x20xf32> to vector<24x20xf32>
    %149 = vector.extract_strided_slice %148 {offsets = [0, 0], sizes = [24, 5], strides = [1, 1]} : vector<24x20xf32> to vector<24x5xf32>
    %150 = arith.negf %149 : vector<24x5xf32>
    %151 = math.exp %150 : vector<24x5xf32>
    %cst_55 = arith.constant 1.000000e+00 : f32
    %152 = vector.broadcast %cst_55 : f32 to vector<24x5xf32>
    %153 = arith.addf %152, %151 : vector<24x5xf32>
    %154 = arith.divf %152, %153 : vector<24x5xf32>
    %155 = vector.extract_strided_slice %148 {offsets = [0, 5], sizes = [24, 5], strides = [1, 1]} : vector<24x20xf32> to vector<24x5xf32>
    %156 = arith.negf %155 : vector<24x5xf32>
    %157 = math.exp %156 : vector<24x5xf32>
    %cst_56 = arith.constant 1.000000e+00 : f32
    %158 = vector.broadcast %cst_56 : f32 to vector<24x5xf32>
    %159 = arith.addf %158, %157 : vector<24x5xf32>
    %160 = arith.divf %158, %159 : vector<24x5xf32>
    %161 = vector.extract_strided_slice %148 {offsets = [0, 10], sizes = [24, 5], strides = [1, 1]} : vector<24x20xf32> to vector<24x5xf32>
    %162 = math.tanh %161 : vector<24x5xf32>
    %163 = vector.extract_strided_slice %148 {offsets = [0, 15], sizes = [24, 5], strides = [1, 1]} : vector<24x20xf32> to vector<24x5xf32>
    %164 = arith.negf %163 : vector<24x5xf32>
    %165 = math.exp %164 : vector<24x5xf32>
    %cst_57 = arith.constant 1.000000e+00 : f32
    %166 = vector.broadcast %cst_57 : f32 to vector<24x5xf32>
    %167 = arith.addf %166, %165 : vector<24x5xf32>
    %168 = arith.divf %166, %167 : vector<24x5xf32>
    %169 = arith.mulf %160, %147 : vector<24x5xf32>
    %170 = arith.mulf %154, %162 : vector<24x5xf32>
    %171 = arith.addf %169, %170 : vector<24x5xf32>
    %172 = math.tanh %171 : vector<24x5xf32>
    %173 = arith.mulf %168, %172 : vector<24x5xf32>
    %174 = vector.extract_strided_slice %146 {offsets = [24, 0], sizes = [24, 20], strides = [1, 1]} : vector<96x20xf32> to vector<24x20xf32>
    %cst_58 = arith.constant dense<0.000000e+00> : vector<24x20xf32>
    %175 = tpu.matmul %173, %12, %cst_58 {dimension_numbers = #tpu.dot_dimension_numbers<[1], [0], [0], [1], [0, 0, 1, 1], [], []>} : vector<24x5xf32>, vector<5x20xf32>, vector<24x20xf32> -> vector<24x20xf32>
    %176 = arith.addf %174, %175 : vector<24x20xf32>
    %177 = vector.extract_strided_slice %176 {offsets = [0, 0], sizes = [24, 5], strides = [1, 1]} : vector<24x20xf32> to vector<24x5xf32>
    %178 = arith.negf %177 : vector<24x5xf32>
    %179 = math.exp %178 : vector<24x5xf32>
    %cst_59 = arith.constant 1.000000e+00 : f32
    %180 = vector.broadcast %cst_59 : f32 to vector<24x5xf32>
    %181 = arith.addf %180, %179 : vector<24x5xf32>
    %182 = arith.divf %180, %181 : vector<24x5xf32>
    %183 = vector.extract_strided_slice %176 {offsets = [0, 5], sizes = [24, 5], strides = [1, 1]} : vector<24x20xf32> to vector<24x5xf32>
    %184 = arith.negf %183 : vector<24x5xf32>
    %185 = math.exp %184 : vector<24x5xf32>
    %cst_60 = arith.constant 1.000000e+00 : f32
    %186 = vector.broadcast %cst_60 : f32 to vector<24x5xf32>
    %187 = arith.addf %186, %185 : vector<24x5xf32>
    %188 = arith.divf %186, %187 : vector<24x5xf32>
    %189 = vector.extract_strided_slice %176 {offsets = [0, 10], sizes = [24, 5], strides = [1, 1]} : vector<24x20xf32> to vector<24x5xf32>
    %190 = math.tanh %189 : vector<24x5xf32>
    %191 = vector.extract_strided_slice %176 {offsets = [0, 15], sizes = [24, 5], strides = [1, 1]} : vector<24x20xf32> to vector<24x5xf32>
    %192 = arith.negf %191 : vector<24x5xf32>
    %193 = math.exp %192 : vector<24x5xf32>
    %cst_61 = arith.constant 1.000000e+00 : f32
    %194 = vector.broadcast %cst_61 : f32 to vector<24x5xf32>
    %195 = arith.addf %194, %193 : vector<24x5xf32>
    %196 = arith.divf %194, %195 : vector<24x5xf32>
    %197 = arith.mulf %188, %171 : vector<24x5xf32>
    %198 = arith.mulf %182, %190 : vector<24x5xf32>
    %199 = arith.addf %197, %198 : vector<24x5xf32>
    %200 = math.tanh %199 : vector<24x5xf32>
    %201 = arith.mulf %196, %200 : vector<24x5xf32>
    %202 = vector.extract_strided_slice %146 {offsets = [48, 0], sizes = [24, 20], strides = [1, 1]} : vector<96x20xf32> to vector<24x20xf32>
    %cst_62 = arith.constant dense<0.000000e+00> : vector<24x20xf32>
    %203 = tpu.matmul %201, %12, %cst_62 {dimension_numbers = #tpu.dot_dimension_numbers<[1], [0], [0], [1], [0, 0, 1, 1], [], []>} : vector<24x5xf32>, vector<5x20xf32>, vector<24x20xf32> -> vector<24x20xf32>
    %204 = arith.addf %202, %203 : vector<24x20xf32>
    %205 = vector.extract_strided_slice %204 {offsets = [0, 0], sizes = [24, 5], strides = [1, 1]} : vector<24x20xf32> to vector<24x5xf32>
    %206 = arith.negf %205 : vector<24x5xf32>
    %207 = math.exp %206 : vector<24x5xf32>
    %cst_63 = arith.constant 1.000000e+00 : f32
    %208 = vector.broadcast %cst_63 : f32 to vector<24x5xf32>
    %209 = arith.addf %208, %207 : vector<24x5xf32>
    %210 = arith.divf %208, %209 : vector<24x5xf32>
    %211 = vector.extract_strided_slice %204 {offsets = [0, 5], sizes = [24, 5], strides = [1, 1]} : vector<24x20xf32> to vector<24x5xf32>
    %212 = arith.negf %211 : vector<24x5xf32>
    %213 = math.exp %212 : vector<24x5xf32>
    %cst_64 = arith.constant 1.000000e+00 : f32
    %214 = vector.broadcast %cst_64 : f32 to vector<24x5xf32>
    %215 = arith.addf %214, %213 : vector<24x5xf32>
    %216 = arith.divf %214, %215 : vector<24x5xf32>
    %217 = vector.extract_strided_slice %204 {offsets = [0, 10], sizes = [24, 5], strides = [1, 1]} : vector<24x20xf32> to vector<24x5xf32>
    %218 = math.tanh %217 : vector<24x5xf32>
    %219 = vector.extract_strided_slice %204 {offsets = [0, 15], sizes = [24, 5], strides = [1, 1]} : vector<24x20xf32> to vector<24x5xf32>
    %220 = arith.negf %219 : vector<24x5xf32>
    %221 = math.exp %220 : vector<24x5xf32>
    %cst_65 = arith.constant 1.000000e+00 : f32
    %222 = vector.broadcast %cst_65 : f32 to vector<24x5xf32>
    %223 = arith.addf %222, %221 : vector<24x5xf32>
    %224 = arith.divf %222, %223 : vector<24x5xf32>
    %225 = arith.mulf %216, %199 : vector<24x5xf32>
    %226 = arith.mulf %210, %218 : vector<24x5xf32>
    %227 = arith.addf %225, %226 : vector<24x5xf32>
    %228 = math.tanh %227 : vector<24x5xf32>
    %229 = arith.mulf %224, %228 : vector<24x5xf32>
    %230 = vector.extract_strided_slice %146 {offsets = [72, 0], sizes = [24, 20], strides = [1, 1]} : vector<96x20xf32> to vector<24x20xf32>
    %cst_66 = arith.constant dense<0.000000e+00> : vector<24x20xf32>
    %231 = tpu.matmul %229, %12, %cst_66 {dimension_numbers = #tpu.dot_dimension_numbers<[1], [0], [0], [1], [0, 0, 1, 1], [], []>} : vector<24x5xf32>, vector<5x20xf32>, vector<24x20xf32> -> vector<24x20xf32>
    %232 = arith.addf %230, %231 : vector<24x20xf32>
    %233 = vector.extract_strided_slice %232 {offsets = [0, 0], sizes = [24, 5], strides = [1, 1]} : vector<24x20xf32> to vector<24x5xf32>
    %234 = arith.negf %233 : vector<24x5xf32>
    %235 = math.exp %234 : vector<24x5xf32>
    %cst_67 = arith.constant 1.000000e+00 : f32
    %236 = vector.broadcast %cst_67 : f32 to vector<24x5xf32>
    %237 = arith.addf %236, %235 : vector<24x5xf32>
    %238 = arith.divf %236, %237 : vector<24x5xf32>
    %239 = vector.extract_strided_slice %232 {offsets = [0, 5], sizes = [24, 5], strides = [1, 1]} : vector<24x20xf32> to vector<24x5xf32>
    %240 = arith.negf %239 : vector<24x5xf32>
    %241 = math.exp %240 : vector<24x5xf32>
    %cst_68 = arith.constant 1.000000e+00 : f32
    %242 = vector.broadcast %cst_68 : f32 to vector<24x5xf32>
    %243 = arith.addf %242, %241 : vector<24x5xf32>
    %244 = arith.divf %242, %243 : vector<24x5xf32>
    %245 = vector.extract_strided_slice %232 {offsets = [0, 10], sizes = [24, 5], strides = [1, 1]} : vector<24x20xf32> to vector<24x5xf32>
    %246 = math.tanh %245 : vector<24x5xf32>
    %247 = arith.mulf %244, %227 : vector<24x5xf32>
    %248 = arith.mulf %238, %246 : vector<24x5xf32>
    %249 = arith.addf %247, %248 : vector<24x5xf32>
    %c0_69 = arith.constant 0 : index
    %c0_70 = arith.constant 0 : index
    %250 = vector.load %arg3[%c0_69, %c0_70] : memref<24x5xf32, #tpu.memory_space<vmem>>, vector<24x5xf32>
    tpu.vector_store %arg3[%c0_69, %c0_70], %249 {strides = array<i32>} : memref<24x5xf32, #tpu.memory_space<vmem>>, vector<24x5xf32>,
    return
  }
}

</mosaic_0001>

<llo_original>
// kernel: agg_lstm_forward.1
$region0: #{agg_lstm_forward.1}
  #allocation0 [shape = 'u32[]', space=smem, size = 0x4, offset = 0x4, fixed_abs, tag = 'smem constant byte address 0x4 - core index']
  #allocation1 [shape = 'u32[144,128]{1,0:T(1,128)}', space=vmem, size = 0x12000, scoped, tag = 'internal scratch']
  %s0 = inlined_call_operand.vmem [shape: s32[96,1], index: 0, kind: input, shape index: {}]
  %s1 = inlined_call_operand.vmem [shape: f32[112,20], index: 1, kind: input, shape index: {}]
  %s2 = inlined_call_operand.vmem [shape: f32[16,23], index: 2, kind: input, shape index: {}]
  %s3 = inlined_call_operand.vmem [shape: f32[24,5], index: 3, kind: output, shape index: {}]
  %s4 = sld [smem:[#allocation0]]
  $region22: #{agg_lstm_forward.1} parent=0
    _
  %s6 = ssub.s32 1, %s4
  %s7 = scalar_select 0, %s6, %s4
  // Predicated region
  $region2: #{agg_lstm_forward.1} parent=0 // pred_check
    _
  $region3: #{agg_lstm_forward.1} parent=0 // pred_check_branch
    %9 = sbr.rel (0) target = $region5
  $region4: #{agg_lstm_forward.1} parent=0 // pred_region
    _
  $region5: #{agg_lstm_forward.1} parent=0 // pred_fallthru
    _
  // Predicated region
  $region6: #{agg_lstm_forward.1} parent=0 // pred_check
    _
  $region7: #{agg_lstm_forward.1} parent=0 // pred_check_branch
    %11 = sbr.rel (0) target = $region9
  $region8: #{agg_lstm_forward.1} parent=0 // pred_region
    _
  $region9: #{agg_lstm_forward.1} parent=0 // pred_fallthru
    _
  // Predicated region
  $region10: #{agg_lstm_forward.1} parent=0 // pred_check
    _
  $region11: #{agg_lstm_forward.1} parent=0 // pred_check_branch
    %13 = sbr.rel (0) target = $region13
  $region12: #{agg_lstm_forward.1} parent=0 // pred_region
    _
  $region13: #{agg_lstm_forward.1} parent=0 // pred_fallthru
    _
  %v14 = vld [vmem:[%s1] sm:$0xff]
  %v15 = vld [vmem:[%s1 + $0x8] sm:$0x1]
  %v16 = vld [vmem:[%s1 + $0x10] sm:$0xff]
  %v17 = vld [vmem:[%s1 + $0x18] sm:$0x1]
  %v18 = vld [vmem:[%s1 + $0x20] sm:$0xff]
  %v19 = vld [vmem:[%s1 + $0x28] sm:$0x1]
  %v20 = vld [vmem:[%s1 + $0x30] sm:$0xff]
  %v21 = vld [vmem:[%s1 + $0x38] sm:$0x1]
  %v22 = vld [vmem:[%s1 + $0x40] sm:$0x1f]
  %v23 = vld [vmem:[%s1 + $0x48] sm:$0x1f]
  %v24 = vld [vmem:[%s1 + $0x50] sm:$0x7]
  %v25 = vld [vmem:[%s1 + $0x58] sm:$0x1f]
  %v26 = vld [vmem:[%s1 + $0x60] sm:$0x1f]
  %v27 = vld [vmem:[%s1 + $0x68] sm:$0x1]
  %v28 = vld [vmem:[%s2] sm:$0xff]
  %vm29 = vcmp.le.f32.partialorder %v28, 0.0
  %v30 = vsel %vm29, 1e-10, %v28
  %vm31 = vcmask 39936
  %v32 = vsel %vm31, %v28, 0.0
  %33 = vadd.xlane.f32.xlu0 %v32
  %v34 = vpop.xlane.xlu0 %33
  %v35 = vrcp.pop 5.0
  %v36 = vmul.f32 %v34, %v35
  %v37 = vsub.f32 %v28, %v36
  %v38 = vmul.f32 %v37, %v37
  %v39 = vsel %vm31, %v38, 0.0
  %40 = vadd.xlane.f32.xlu0 %v39
  %v41 = vpop.xlane.xlu0 %40
  %v42 = vmul.f32 %v41, %v35
  %v43 = vadd.f32 %v42, 1e-05
  %v44 = vrsqrt.pop %v43
  %v45 = vmul.f32 %v37, %v44
  %v46 = vlaneseq
  %v47 = vshrl.u32 %v46, 7
  %v48 = vsub.s32 0, %v47
  %v49 = vrot.slane %v24, %v48
  %v50 = vmul.f32 %v45, %v49
  %v51 = vlaneseq
  %v52 = vshrl.u32 %v51, 7
  %v53 = vsub.s32 1, %v52
  %v54 = vrot.slane %v24, %v53
  %v55 = vadd.f32 %v50, %v54
  %v57 = vsel %vm31, %v55, 0
  %vm59 = vcmask 1044480
  %v61 = vsel %vm59, %v22, 0
  %63 = vmatprep.subr.mxu0 0.0
  %64 = vmatpush1.msra.mxu0 %v61
  %65 = vmatprep.subr.mxu0 0.0
  %66 = vmatpush1.msra.mxu0 0.0
  %67 = vmatprep.subr.mxu0 0.0
  %68 = vmatpush1.msra.mxu0 0.0
  %69 = vmatprep.subr.mxu0 0.0
  %70 = vmatpush1.msra.mxu0 0.0
  %71 = vmatprep.subr.mxu0 0.0
  %72 = vmatpush1.msra.mxu0 0.0
  %73 = vmatprep.subr.mxu0 0.0
  %74 = vmatpush1.msra.mxu0 0.0
  %75 = vmatprep.subr.mxu0 0.0
  %76 = vmatpush1.msra.mxu0 0.0
  %77 = vmatprep.subr.mxu0 0.0
  %78 = vmatpush1.msra.mxu0 0.0
  %79 = vmatprep.subr.mxu0 0.0
  %80 = vmatpush1.msra.mxu0 0.0
  %81 = vmatprep.subr.mxu0 0.0
  %82 = vmatpush1.msra.mxu0 0.0
  %83 = vmatprep.subr.mxu0 0.0
  %84 = vmatpush1.msra.mxu0 0.0
  %85 = vmatprep.subr.mxu0 0.0
  %86 = vmatpush1.msra.mxu0 0.0
  %87 = vmatprep.subr.mxu0 0.0
  %88 = vmatpush1.msra.mxu0 0.0
  %89 = vmatprep.subr.mxu0 0.0
  %90 = vmatpush1.msra.mxu0 0.0
  %91 = vmatprep.subr.mxu0 0.0
  %92 = vmatpush1.msra.mxu0 0.0
  %93 = vmatprep.subr.mxu0 0.0
  %94 = vmatpush1.msra.mxu0 0.0
  %95 = vmatprep.subr.mxu0 0.0
  %96 = vmatpush1.msra.mxu0 0.0
  %97 = vmatprep.subr.mxu0 0.0
  %98 = vmatpush1.msra.mxu0 0.0
  %99 = vmatprep.subr.mxu0 0.0
  %100 = vmatpush1.msra.mxu0 0.0
  %101 = vmatprep.subr.mxu0 0.0
  %102 = vmatpush1.msra.mxu0 0.0
  %103 = vmatprep.subr.mxu0 0.0
  %104 = vmatpush1.msra.mxu0 0.0
  %105 = vmatprep.subr.mxu0 0.0
  %106 = vmatpush1.msra.mxu0 0.0
  %107 = vmatprep.subr.mxu0 0.0
  %108 = vmatpush1.msra.mxu0 0.0
  %109 = vmatprep.subr.mxu0 0.0
  %110 = vmatpush1.msra.mxu0 0.0
  %111 = vmatprep.subr.mxu0 0.0
  %112 = vmatpush1.msra.mxu0 0.0
  %113 = vmatprep.subr.mxu0 0.0
  %114 = vmatpush1.msra.mxu0 0.0
  %115 = vmatprep.subr.mxu0 0.0
  %116 = vmatpush1.msra.mxu0 0.0
  %117 = vmatprep.subr.mxu0 0.0
  %118 = vmatpush1.msra.mxu0 0.0
  %119 = vmatprep.subr.mxu0 0.0
  %120 = vmatpush1.msra.mxu0 0.0
  %121 = vmatprep.subr.mxu0 0.0
  %122 = vmatpush1.msra.mxu0 0.0
  %123 = vmatprep.subr.mxu0 0.0
  %124 = vmatpush1.msra.mxu0 0.0
  %125 = vmatprep.subr.mxu0 0.0
  %126 = vmatpush1.msra.mxu0 0.0
  %127 = vmatprep.mubr.f32.mxu0 0.0
  %128 = vmatmul.mubr.f32.gmra.mrb[0].mxu0 %v57
  %v129 = vpop.f32.mrb[0].mxu0
  %v130 = vadd.f32 0.0, %v129
  %v131 = vpop.f32.mrb[0].mxu0
  %132 = vdwg.mxu0
  %v134 = vsel %vm59, %v23, 0
  %136 = vmatprep.subr.mxu0 0.0
  %137 = vmatpush1.msra.mxu0 %v134
  %138 = vmatprep.subr.mxu0 0.0
  %139 = vmatpush1.msra.mxu0 0.0
  %140 = vmatprep.subr.mxu0 0.0
  %141 = vmatpush1.msra.mxu0 0.0
  %142 = vmatprep.subr.mxu0 0.0
  %143 = vmatpush1.msra.mxu0 0.0
  %144 = vmatprep.subr.mxu0 0.0
  %145 = vmatpush1.msra.mxu0 0.0
  %146 = vmatprep.subr.mxu0 0.0
  %147 = vmatpush1.msra.mxu0 0.0
  %148 = vmatprep.subr.mxu0 0.0
  %149 = vmatpush1.msra.mxu0 0.0
  %150 = vmatprep.subr.mxu0 0.0
  %151 = vmatpush1.msra.mxu0 0.0
  %152 = vmatprep.subr.mxu0 0.0
  %153 = vmatpush1.msra.mxu0 0.0
  %154 = vmatprep.subr.mxu0 0.0
  %155 = vmatpush1.msra.mxu0 0.0
  %156 = vmatprep.subr.mxu0 0.0
  %157 = vmatpush1.msra.mxu0 0.0
  %158 = vmatprep.subr.mxu0 0.0
  %159 = vmatpush1.msra.mxu0 0.0
  %160 = vmatprep.subr.mxu0 0.0
  %161 = vmatpush1.msra.mxu0 0.0
  %162 = vmatprep.subr.mxu0 0.0
  %163 = vmatpush1.msra.mxu0 0.0
  %164 = vmatprep.subr.mxu0 0.0
  %165 = vmatpush1.msra.mxu0 0.0
  %166 = vmatprep.subr.mxu0 0.0
  %167 = vmatpush1.msra.mxu0 0.0
  %168 = vmatprep.subr.mxu0 0.0
  %169 = vmatpush1.msra.mxu0 0.0
  %170 = vmatprep.subr.mxu0 0.0
  %171 = vmatpush1.msra.mxu0 0.0
  %172 = vmatprep.subr.mxu0 0.0
  %173 = vmatpush1.msra.mxu0 0.0
  %174 = vmatprep.subr.mxu0 0.0
  %175 = vmatpush1.msra.mxu0 0.0
  %176 = vmatprep.subr.mxu0 0.0
  %177 = vmatpush1.msra.mxu0 0.0
  %178 = vmatprep.subr.mxu0 0.0
  %179 = vmatpush1.msra.mxu0 0.0
  %180 = vmatprep.subr.mxu0 0.0
  %181 = vmatpush1.msra.mxu0 0.0
  %182 = vmatprep.subr.mxu0 0.0
  %183 = vmatpush1.msra.mxu0 0.0
  %184 = vmatprep.subr.mxu0 0.0
  %185 = vmatpush1.msra.mxu0 0.0
  %186 = vmatprep.subr.mxu0 0.0
  %187 = vmatpush1.msra.mxu0 0.0
  %188 = vmatprep.subr.mxu0 0.0
  %189 = vmatpush1.msra.mxu0 0.0
  %190 = vmatprep.subr.mxu0 0.0
  %191 = vmatpush1.msra.mxu0 0.0
  %192 = vmatprep.subr.mxu0 0.0
  %193 = vmatpush1.msra.mxu0 0.0
  %194 = vmatprep.subr.mxu0 0.0
  %195 = vmatpush1.msra.mxu0 0.0
  %196 = vmatprep.subr.mxu0 0.0
  %197 = vmatpush1.msra.mxu0 0.0
  %198 = vmatprep.subr.mxu0 0.0
  %199 = vmatpush1.msra.mxu0 0.0
  %200 = vmatprep.mubr.f32.mxu0 0.0
  %201 = vmatmul.mubr.f32.gmra.mrb[0].mxu0 %v57
  %v202 = vpop.f32.mrb[0].mxu0
  %v203 = vadd.f32 0.0, %v202
  %v204 = vpop.f32.mrb[0].mxu0
  %205 = vdwg.mxu0
  %207 = vrot.lane.b32.xlu0 %v30, 114
  %v208 = vpop.permute.xlu0 %207
  %vm209 = vcmask 72704
  %v210 = vsel %vm209, %v208, 0
  %vm212 = vcmask 1040384
  %v214 = vsel %vm212, %v15, 0
  %216 = vmatprep.subr.mxu0 0.0
  %217 = vmatpush1.msra.mxu0 %v14
  %218 = vmatprep.subr.mxu0 0.0
  %219 = vmatpush1.msra.mxu0 %v214
  %220 = vmatprep.subr.mxu0 0.0
  %221 = vmatpush1.msra.mxu0 0.0
  %222 = vmatprep.subr.mxu0 0.0
  %223 = vmatpush1.msra.mxu0 0.0
  %224 = vmatprep.subr.mxu0 0.0
  %225 = vmatpush1.msra.mxu0 0.0
  %226 = vmatprep.subr.mxu0 0.0
  %227 = vmatpush1.msra.mxu0 0.0
  %228 = vmatprep.subr.mxu0 0.0
  %229 = vmatpush1.msra.mxu0 0.0
  %230 = vmatprep.subr.mxu0 0.0
  %231 = vmatpush1.msra.mxu0 0.0
  %232 = vmatprep.subr.mxu0 0.0
  %233 = vmatpush1.msra.mxu0 0.0
  %234 = vmatprep.subr.mxu0 0.0
  %235 = vmatpush1.msra.mxu0 0.0
  %236 = vmatprep.subr.mxu0 0.0
  %237 = vmatpush1.msra.mxu0 0.0
  %238 = vmatprep.subr.mxu0 0.0
  %239 = vmatpush1.msra.mxu0 0.0
  %240 = vmatprep.subr.mxu0 0.0
  %241 = vmatpush1.msra.mxu0 0.0
  %242 = vmatprep.subr.mxu0 0.0
  %243 = vmatpush1.msra.mxu0 0.0
  %244 = vmatprep.subr.mxu0 0.0
  %245 = vmatpush1.msra.mxu0 0.0
  %246 = vmatprep.subr.mxu0 0.0
  %247 = vmatpush1.msra.mxu0 0.0
  %248 = vmatprep.subr.mxu0 0.0
  %249 = vmatpush1.msra.mxu0 0.0
  %250 = vmatprep.subr.mxu0 0.0
  %251 = vmatpush1.msra.mxu0 0.0
  %252 = vmatprep.subr.mxu0 0.0
  %253 = vmatpush1.msra.mxu0 0.0
  %254 = vmatprep.subr.mxu0 0.0
  %255 = vmatpush1.msra.mxu0 0.0
  %256 = vmatprep.subr.mxu0 0.0
  %257 = vmatpush1.msra.mxu0 0.0
  %258 = vmatprep.subr.mxu0 0.0
  %259 = vmatpush1.msra.mxu0 0.0
  %260 = vmatprep.subr.mxu0 0.0
  %261 = vmatpush1.msra.mxu0 0.0
  %262 = vmatprep.subr.mxu0 0.0
  %263 = vmatpush1.msra.mxu0 0.0
  %264 = vmatprep.subr.mxu0 0.0
  %265 = vmatpush1.msra.mxu0 0.0
  %266 = vmatprep.subr.mxu0 0.0
  %267 = vmatpush1.msra.mxu0 0.0
  %268 = vmatprep.subr.mxu0 0.0
  %269 = vmatpush1.msra.mxu0 0.0
  %270 = vmatprep.subr.mxu0 0.0
  %271 = vmatpush1.msra.mxu0 0.0
  %272 = vmatprep.subr.mxu0 0.0
  %273 = vmatpush1.msra.mxu0 0.0
  %274 = vmatprep.subr.mxu0 0.0
  %275 = vmatpush1.msra.mxu0 0.0
  %276 = vmatprep.subr.mxu0 0.0
  %277 = vmatpush1.msra.mxu0 0.0
  %278 = vmatprep.subr.mxu0 0.0
  %279 = vmatpush1.msra.mxu0 0.0
  %280 = vmatprep.mubr.f32.mxu0 0.0
  %281 = vmatmul.mubr.f32.gmra.mrb[0].mxu0 %v210
  %v282 = vpop.f32.mrb[0].mxu0
  %v283 = vadd.f32 0.0, %v282
  %v284 = vpop.f32.mrb[0].mxu0
  %285 = vdwg.mxu0
  %v287 = vrot.slane %v24, 2
  %s288 = vtos %v287
  %v289 = vstv %s288
  %v291 = vadd.f32 %v289, %v283
  %292 = vrot.lane.b32.xlu0 %v30, 119
  %v293 = vpop.permute.xlu0 %292
  %v295 = vmul.f32 %v30, %v293
  %297 = vrot.lane.b32.xlu0 %v295, 123
  %v298 = vpop.permute.xlu0 %297
  %v299 = vsel %vm209, %v298, 0
  %v302 = vsel %vm212, %v17, 0
  %304 = vmatprep.subr.mxu0 0.0
  %305 = vmatpush1.msra.mxu0 %v16
  %306 = vmatprep.subr.mxu0 0.0
  %307 = vmatpush1.msra.mxu0 %v302
  %308 = vmatprep.subr.mxu0 0.0
  %309 = vmatpush1.msra.mxu0 0.0
  %310 = vmatprep.subr.mxu0 0.0
  %311 = vmatpush1.msra.mxu0 0.0
  %312 = vmatprep.subr.mxu0 0.0
  %313 = vmatpush1.msra.mxu0 0.0
  %314 = vmatprep.subr.mxu0 0.0
  %315 = vmatpush1.msra.mxu0 0.0
  %316 = vmatprep.subr.mxu0 0.0
  %317 = vmatpush1.msra.mxu0 0.0
  %318 = vmatprep.subr.mxu0 0.0
  %319 = vmatpush1.msra.mxu0 0.0
  %320 = vmatprep.subr.mxu0 0.0
  %321 = vmatpush1.msra.mxu0 0.0
  %322 = vmatprep.subr.mxu0 0.0
  %323 = vmatpush1.msra.mxu0 0.0
  %324 = vmatprep.subr.mxu0 0.0
  %325 = vmatpush1.msra.mxu0 0.0
  %326 = vmatprep.subr.mxu0 0.0
  %327 = vmatpush1.msra.mxu0 0.0
  %328 = vmatprep.subr.mxu0 0.0
  %329 = vmatpush1.msra.mxu0 0.0
  %330 = vmatprep.subr.mxu0 0.0
  %331 = vmatpush1.msra.mxu0 0.0
  %332 = vmatprep.subr.mxu0 0.0
  %333 = vmatpush1.msra.mxu0 0.0
  %334 = vmatprep.subr.mxu0 0.0
  %335 = vmatpush1.msra.mxu0 0.0
  %336 = vmatprep.subr.mxu0 0.0
  %337 = vmatpush1.msra.mxu0 0.0
  %338 = vmatprep.subr.mxu0 0.0
  %339 = vmatpush1.msra.mxu0 0.0
  %340 = vmatprep.subr.mxu0 0.0
  %341 = vmatpush1.msra.mxu0 0.0
  %342 = vmatprep.subr.mxu0 0.0
  %343 = vmatpush1.msra.mxu0 0.0
  %344 = vmatprep.subr.mxu0 0.0
  %345 = vmatpush1.msra.mxu0 0.0
  %346 = vmatprep.subr.mxu0 0.0
  %347 = vmatpush1.msra.mxu0 0.0
  %348 = vmatprep.subr.mxu0 0.0
  %349 = vmatpush1.msra.mxu0 0.0
  %350 = vmatprep.subr.mxu0 0.0
  %351 = vmatpush1.msra.mxu0 0.0
  %352 = vmatprep.subr.mxu0 0.0
  %353 = vmatpush1.msra.mxu0 0.0
  %354 = vmatprep.subr.mxu0 0.0
  %355 = vmatpush1.msra.mxu0 0.0
  %356 = vmatprep.subr.mxu0 0.0
  %357 = vmatpush1.msra.mxu0 0.0
  %358 = vmatprep.subr.mxu0 0.0
  %359 = vmatpush1.msra.mxu0 0.0
  %360 = vmatprep.subr.mxu0 0.0
  %361 = vmatpush1.msra.mxu0 0.0
  %362 = vmatprep.subr.mxu0 0.0
  %363 = vmatpush1.msra.mxu0 0.0
  %364 = vmatprep.subr.mxu0 0.0
  %365 = vmatpush1.msra.mxu0 0.0
  %366 = vmatprep.subr.mxu0 0.0
  %367 = vmatpush1.msra.mxu0 0.0
  %368 = vmatprep.mubr.f32.mxu0 0.0
  %369 = vmatmul.mubr.f32.gmra.mrb[0].mxu0 %v299
  %v370 = vpop.f32.mrb[0].mxu0
  %v371 = vadd.f32 0.0, %v370
  %v372 = vpop.f32.mrb[0].mxu0
  %373 = vdwg.mxu0
  %v374 = vadd.f32 %v291, %v371
  %v376 = vsel %vm31, %v374, 0
  %v379 = vsel %vm31, %v130, 0
  %381 = vmatprep.subr.mxu0 0.0
  %382 = vmatpush1.xpose.msra.mxu0 %v379
  %383 = vmatprep.subr.mxu0 0.0
  %384 = vmatpush1.xpose.msra.mxu0 0.0
  %385 = vmatprep.subr.mxu0 0.0
  %386 = vmatpush1.xpose.msra.mxu0 0.0
  %387 = vmatprep.subr.mxu0 0.0
  %388 = vmatpush1.xpose.msra.mxu0 0.0
  %389 = vmatprep.subr.mxu0 0.0
  %390 = vmatpush1.xpose.msra.mxu0 0.0
  %391 = vmatprep.subr.mxu0 0.0
  %392 = vmatpush1.xpose.msra.mxu0 0.0
  %393 = vmatprep.subr.mxu0 0.0
  %394 = vmatpush1.xpose.msra.mxu0 0.0
  %395 = vmatprep.subr.mxu0 0.0
  %396 = vmatpush1.xpose.msra.mxu0 0.0
  %397 = vmatprep.subr.mxu0 0.0
  %398 = vmatpush1.xpose.msra.mxu0 0.0
  %399 = vmatprep.subr.mxu0 0.0
  %400 = vmatpush1.xpose.msra.mxu0 0.0
  %401 = vmatprep.subr.mxu0 0.0
  %402 = vmatpush1.xpose.msra.mxu0 0.0
  %403 = vmatprep.subr.mxu0 0.0
  %404 = vmatpush1.xpose.msra.mxu0 0.0
  %405 = vmatprep.subr.mxu0 0.0
  %406 = vmatpush1.xpose.msra.mxu0 0.0
  %407 = vmatprep.subr.mxu0 0.0
  %408 = vmatpush1.xpose.msra.mxu0 0.0
  %409 = vmatprep.subr.mxu0 0.0
  %410 = vmatpush1.xpose.msra.mxu0 0.0
  %411 = vmatprep.subr.mxu0 0.0
  %412 = vmatpush1.xpose.msra.mxu0 0.0
  %413 = vmatprep.subr.mxu0 0.0
  %414 = vmatpush1.xpose.msra.mxu0 0.0
  %415 = vmatprep.subr.mxu0 0.0
  %416 = vmatpush1.xpose.msra.mxu0 0.0
  %417 = vmatprep.subr.mxu0 0.0
  %418 = vmatpush1.xpose.msra.mxu0 0.0
  %419 = vmatprep.subr.mxu0 0.0
  %420 = vmatpush1.xpose.msra.mxu0 0.0
  %421 = vmatprep.subr.mxu0 0.0
  %422 = vmatpush1.xpose.msra.mxu0 0.0
  %423 = vmatprep.subr.mxu0 0.0
  %424 = vmatpush1.xpose.msra.mxu0 0.0
  %425 = vmatprep.subr.mxu0 0.0
  %426 = vmatpush1.xpose.msra.mxu0 0.0
  %427 = vmatprep.subr.mxu0 0.0
  %428 = vmatpush1.xpose.msra.mxu0 0.0
  %429 = vmatprep.subr.mxu0 0.0
  %430 = vmatpush1.xpose.msra.mxu0 0.0
  %431 = vmatprep.subr.mxu0 0.0
  %432 = vmatpush1.xpose.msra.mxu0 0.0
  %433 = vmatprep.subr.mxu0 0.0
  %434 = vmatpush1.xpose.msra.mxu0 0.0
  %435 = vmatprep.subr.mxu0 0.0
  %436 = vmatpush1.xpose.msra.mxu0 0.0
  %437 = vmatprep.subr.mxu0 0.0
  %438 = vmatpush1.xpose.msra.mxu0 0.0
  %439 = vmatprep.subr.mxu0 0.0
  %440 = vmatpush1.xpose.msra.mxu0 0.0
  %441 = vmatprep.subr.mxu0 0.0
  %442 = vmatpush1.xpose.msra.mxu0 0.0
  %443 = vmatprep.subr.mxu0 0.0
  %444 = vmatpush1.xpose.msra.mxu0 0.0
  %445 = vmatprep.mubr.f32.mxu0 0.0
  %446 = vmatmul.mubr.f32.gmra.mrb[0].mxu0 %v376
  %v447 = vpop.f32.mrb[0].mxu0
  %v448 = vadd.f32 0.0, %v447
  %v449 = vpop.f32.mrb[0].mxu0
  %450 = vdwg.mxu0
  %v451 = vmul.f32 %v448, 0.4472136
  %vm452 = vcmask 64512
  %v453 = vsel %vm452, %v451, -inf
  %454 = vmax.xlane.f32.xlu0 %v453
  %v455 = vpop.xlane.xlu0 %454
  %v456 = vsub.f32 %v451, %v455
  %v457 = vmul.f32 %v456, 1.442695
  %v458 = vpow.pop %v457
  %v459 = vsel %vm452, %v458, 0.0
  %460 = vadd.xlane.f32.xlu0 %v459
  %v461 = vpop.xlane.xlu0 %460
  %v462 = vadd.f32 %v461, 1.0
  %v463 = vrcp.pop %v462
  %v464 = vmul.f32 %v458, %v463
  %v466 = vsel %vm452, %v464, 0
  %468 = vmatprep.subr.mxu0 0.0
  %469 = vmatpush1.msra.mxu0 %v203
  %470 = vmatprep.subr.mxu0 0.0
  %471 = vmatpush1.msra.mxu0 0.0
  %472 = vmatprep.subr.mxu0 0.0
  %473 = vmatpush1.msra.mxu0 0.0
  %474 = vmatprep.subr.mxu0 0.0
  %475 = vmatpush1.msra.mxu0 0.0
  %476 = vmatprep.subr.mxu0 0.0
  %477 = vmatpush1.msra.mxu0 0.0
  %478 = vmatprep.subr.mxu0 0.0
  %479 = vmatpush1.msra.mxu0 0.0
  %480 = vmatprep.subr.mxu0 0.0
  %481 = vmatpush1.msra.mxu0 0.0
  %482 = vmatprep.subr.mxu0 0.0
  %483 = vmatpush1.msra.mxu0 0.0
  %484 = vmatprep.subr.mxu0 0.0
  %485 = vmatpush1.msra.mxu0 0.0
  %486 = vmatprep.subr.mxu0 0.0
  %487 = vmatpush1.msra.mxu0 0.0
  %488 = vmatprep.subr.mxu0 0.0
  %489 = vmatpush1.msra.mxu0 0.0
  %490 = vmatprep.subr.mxu0 0.0
  %491 = vmatpush1.msra.mxu0 0.0
  %492 = vmatprep.subr.mxu0 0.0
  %493 = vmatpush1.msra.mxu0 0.0
  %494 = vmatprep.subr.mxu0 0.0
  %495 = vmatpush1.msra.mxu0 0.0
  %496 = vmatprep.subr.mxu0 0.0
  %497 = vmatpush1.msra.mxu0 0.0
  %498 = vmatprep.subr.mxu0 0.0
  %499 = vmatpush1.msra.mxu0 0.0
  %500 = vmatprep.subr.mxu0 0.0
  %501 = vmatpush1.msra.mxu0 0.0
  %502 = vmatprep.subr.mxu0 0.0
  %503 = vmatpush1.msra.mxu0 0.0
  %504 = vmatprep.subr.mxu0 0.0
  %505 = vmatpush1.msra.mxu0 0.0
  %506 = vmatprep.subr.mxu0 0.0
  %507 = vmatpush1.msra.mxu0 0.0
  %508 = vmatprep.subr.mxu0 0.0
  %509 = vmatpush1.msra.mxu0 0.0
  %510 = vmatprep.subr.mxu0 0.0
  %511 = vmatpush1.msra.mxu0 0.0
  %512 = vmatprep.subr.mxu0 0.0
  %513 = vmatpush1.msra.mxu0 0.0
  %514 = vmatprep.subr.mxu0 0.0
  %515 = vmatpush1.msra.mxu0 0.0
  %516 = vmatprep.subr.mxu0 0.0
  %517 = vmatpush1.msra.mxu0 0.0
  %518 = vmatprep.subr.mxu0 0.0
  %519 = vmatpush1.msra.mxu0 0.0
  %520 = vmatprep.subr.mxu0 0.0
  %521 = vmatpush1.msra.mxu0 0.0
  %522 = vmatprep.subr.mxu0 0.0
  %523 = vmatpush1.msra.mxu0 0.0
  %524 = vmatprep.subr.mxu0 0.0
  %525 = vmatpush1.msra.mxu0 0.0
  %526 = vmatprep.subr.mxu0 0.0
  %527 = vmatpush1.msra.mxu0 0.0
  %528 = vmatprep.subr.mxu0 0.0
  %529 = vmatpush1.msra.mxu0 0.0
  %530 = vmatprep.subr.mxu0 0.0
  %531 = vmatpush1.msra.mxu0 0.0
  %532 = vmatprep.mubr.f32.mxu0 0.0
  %533 = vmatmul.mubr.f32.gmra.mrb[0].mxu0 %v466
  %v534 = vpop.f32.mrb[0].mxu0
  %v535 = vadd.f32 %v55, %v534
  %v536 = vpop.f32.mrb[0].mxu0
  %537 = vdwg.mxu0
  %v538 = vld [vmem:[%s2 + $0x8] sm:$0xff]
  %vm539 = vcmp.le.f32.partialorder %v538, 0.0
  %v540 = vsel %vm539, 1e-10, %v538
  %v541 = vsel %vm31, %v538, 0.0
  %542 = vadd.xlane.f32.xlu0 %v541
  %v543 = vpop.xlane.xlu0 %542
  %v544 = vmul.f32 %v543, %v35
  %v545 = vsub.f32 %v538, %v544
  %v546 = vmul.f32 %v545, %v545
  %v547 = vsel %vm31, %v546, 0.0
  %548 = vadd.xlane.f32.xlu0 %v547
  %v549 = vpop.xlane.xlu0 %548
  %v550 = vmul.f32 %v549, %v35
  %v551 = vadd.f32 %v550, 1e-05
  %v552 = vrsqrt.pop %v551
  %v553 = vmul.f32 %v545, %v552
  %v554 = vmul.f32 %v553, %v49
  %v555 = vadd.f32 %v554, %v54
  %v557 = vsel %vm31, %v555, 0
  %559 = vmatprep.subr.mxu0 0.0
  %560 = vmatpush1.msra.mxu0 %v61
  %561 = vmatprep.subr.mxu0 0.0
  %562 = vmatpush1.msra.mxu0 0.0
  %563 = vmatprep.subr.mxu0 0.0
  %564 = vmatpush1.msra.mxu0 0.0
  %565 = vmatprep.subr.mxu0 0.0
  %566 = vmatpush1.msra.mxu0 0.0
  %567 = vmatprep.subr.mxu0 0.0
  %568 = vmatpush1.msra.mxu0 0.0
  %569 = vmatprep.subr.mxu0 0.0
  %570 = vmatpush1.msra.mxu0 0.0
  %571 = vmatprep.subr.mxu0 0.0
  %572 = vmatpush1.msra.mxu0 0.0
  %573 = vmatprep.subr.mxu0 0.0
  %574 = vmatpush1.msra.mxu0 0.0
  %575 = vmatprep.subr.mxu0 0.0
  %576 = vmatpush1.msra.mxu0 0.0
  %577 = vmatprep.subr.mxu0 0.0
  %578 = vmatpush1.msra.mxu0 0.0
  %579 = vmatprep.subr.mxu0 0.0
  %580 = vmatpush1.msra.mxu0 0.0
  %581 = vmatprep.subr.mxu0 0.0
  %582 = vmatpush1.msra.mxu0 0.0
  %583 = vmatprep.subr.mxu0 0.0
  %584 = vmatpush1.msra.mxu0 0.0
  %585 = vmatprep.subr.mxu0 0.0
  %586 = vmatpush1.msra.mxu0 0.0
  %587 = vmatprep.subr.mxu0 0.0
  %588 = vmatpush1.msra.mxu0 0.0
  %589 = vmatprep.subr.mxu0 0.0
  %590 = vmatpush1.msra.mxu0 0.0
  %591 = vmatprep.subr.mxu0 0.0
  %592 = vmatpush1.msra.mxu0 0.0
  %593 = vmatprep.subr.mxu0 0.0
  %594 = vmatpush1.msra.mxu0 0.0
  %595 = vmatprep.subr.mxu0 0.0
  %596 = vmatpush1.msra.mxu0 0.0
  %597 = vmatprep.subr.mxu0 0.0
  %598 = vmatpush1.msra.mxu0 0.0
  %599 = vmatprep.subr.mxu0 0.0
  %600 = vmatpush1.msra.mxu0 0.0
  %601 = vmatprep.subr.mxu0 0.0
  %602 = vmatpush1.msra.mxu0 0.0
  %603 = vmatprep.subr.mxu0 0.0
  %604 = vmatpush1.msra.mxu0 0.0
  %605 = vmatprep.subr.mxu0 0.0
  %606 = vmatpush1.msra.mxu0 0.0
  %607 = vmatprep.subr.mxu0 0.0
  %608 = vmatpush1.msra.mxu0 0.0
  %609 = vmatprep.subr.mxu0 0.0
  %610 = vmatpush1.msra.mxu0 0.0
  %611 = vmatprep.subr.mxu0 0.0
  %612 = vmatpush1.msra.mxu0 0.0
  %613 = vmatprep.subr.mxu0 0.0
  %614 = vmatpush1.msra.mxu0 0.0
  %615 = vmatprep.subr.mxu0 0.0
  %616 = vmatpush1.msra.mxu0 0.0
  %617 = vmatprep.subr.mxu0 0.0
  %618 = vmatpush1.msra.mxu0 0.0
  %619 = vmatprep.subr.mxu0 0.0
  %620 = vmatpush1.msra.mxu0 0.0
  %621 = vmatprep.subr.mxu0 0.0
  %622 = vmatpush1.msra.mxu0 0.0
  %623 = vmatprep.mubr.f32.mxu0 0.0
  %624 = vmatmul.mubr.f32.gmra.mrb[0].mxu0 %v557
  %v625 = vpop.f32.mrb[0].mxu0
  %v626 = vadd.f32 0.0, %v625
  %v627 = vpop.f32.mrb[0].mxu0
  %628 = vdwg.mxu0
  %629 = vmatprep.subr.mxu0 0.0
  %630 = vmatpush1.msra.mxu0 %v134
  %631 = vmatprep.subr.mxu0 0.0
  %632 = vmatpush1.msra.mxu0 0.0
  %633 = vmatprep.subr.mxu0 0.0
  %634 = vmatpush1.msra.mxu0 0.0
  %635 = vmatprep.subr.mxu0 0.0
  %636 = vmatpush1.msra.mxu0 0.0
  %637 = vmatprep.subr.mxu0 0.0
  %638 = vmatpush1.msra.mxu0 0.0
  %639 = vmatprep.subr.mxu0 0.0
  %640 = vmatpush1.msra.mxu0 0.0
  %641 = vmatprep.subr.mxu0 0.0
  %642 = vmatpush1.msra.mxu0 0.0
  %643 = vmatprep.subr.mxu0 0.0
  %644 = vmatpush1.msra.mxu0 0.0
  %645 = vmatprep.subr.mxu0 0.0
  %646 = vmatpush1.msra.mxu0 0.0
  %647 = vmatprep.subr.mxu0 0.0
  %648 = vmatpush1.msra.mxu0 0.0
  %649 = vmatprep.subr.mxu0 0.0
  %650 = vmatpush1.msra.mxu0 0.0
  %651 = vmatprep.subr.mxu0 0.0
  %652 = vmatpush1.msra.mxu0 0.0
  %653 = vmatprep.subr.mxu0 0.0
  %654 = vmatpush1.msra.mxu0 0.0
  %655 = vmatprep.subr.mxu0 0.0
  %656 = vmatpush1.msra.mxu0 0.0
  %657 = vmatprep.subr.mxu0 0.0
  %658 = vmatpush1.msra.mxu0 0.0
  %659 = vmatprep.subr.mxu0 0.0
  %660 = vmatpush1.msra.mxu0 0.0
  %661 = vmatprep.subr.mxu0 0.0
  %662 = vmatpush1.msra.mxu0 0.0
  %663 = vmatprep.subr.mxu0 0.0
  %664 = vmatpush1.msra.mxu0 0.0
  %665 = vmatprep.subr.mxu0 0.0
  %666 = vmatpush1.msra.mxu0 0.0
  %667 = vmatprep.subr.mxu0 0.0
  %668 = vmatpush1.msra.mxu0 0.0
  %669 = vmatprep.subr.mxu0 0.0
  %670 = vmatpush1.msra.mxu0 0.0
  %671 = vmatprep.subr.mxu0 0.0
  %672 = vmatpush1.msra.mxu0 0.0
  %673 = vmatprep.subr.mxu0 0.0
  %674 = vmatpush1.msra.mxu0 0.0
  %675 = vmatprep.subr.mxu0 0.0
  %676 = vmatpush1.msra.mxu0 0.0
  %677 = vmatprep.subr.mxu0 0.0
  %678 = vmatpush1.msra.mxu0 0.0
  %679 = vmatprep.subr.mxu0 0.0
  %680 = vmatpush1.msra.mxu0 0.0
  %681 = vmatprep.subr.mxu0 0.0
  %682 = vmatpush1.msra.mxu0 0.0
  %683 = vmatprep.subr.mxu0 0.0
  %684 = vmatpush1.msra.mxu0 0.0
  %685 = vmatprep.subr.mxu0 0.0
  %686 = vmatpush1.msra.mxu0 0.0
  %687 = vmatprep.subr.mxu0 0.0
  %688 = vmatpush1.msra.mxu0 0.0
  %689 = vmatprep.subr.mxu0 0.0
  %690 = vmatpush1.msra.mxu0 0.0
  %691 = vmatprep.subr.mxu0 0.0
  %692 = vmatpush1.msra.mxu0 0.0
  %693 = vmatprep.mubr.f32.mxu0 0.0
  %694 = vmatmul.mubr.f32.gmra.mrb[0].mxu0 %v557
  %v695 = vpop.f32.mrb[0].mxu0
  %v696 = vadd.f32 0.0, %v695
  %v697 = vpop.f32.mrb[0].mxu0
  %698 = vdwg.mxu0
  %700 = vrot.lane.b32.xlu0 %v540, 114
  %v701 = vpop.permute.xlu0 %700
  %v702 = vsel %vm209, %v701, 0
  %v705 = vsel %vm212, %v19, 0
  %707 = vmatprep.subr.mxu0 0.0
  %708 = vmatpush1.msra.mxu0 %v18
  %709 = vmatprep.subr.mxu0 0.0
  %710 = vmatpush1.msra.mxu0 %v705
  %711 = vmatprep.subr.mxu0 0.0
  %712 = vmatpush1.msra.mxu0 0.0
  %713 = vmatprep.subr.mxu0 0.0
  %714 = vmatpush1.msra.mxu0 0.0
  %715 = vmatprep.subr.mxu0 0.0
  %716 = vmatpush1.msra.mxu0 0.0
  %717 = vmatprep.subr.mxu0 0.0
  %718 = vmatpush1.msra.mxu0 0.0
  %719 = vmatprep.subr.mxu0 0.0
  %720 = vmatpush1.msra.mxu0 0.0
  %721 = vmatprep.subr.mxu0 0.0
  %722 = vmatpush1.msra.mxu0 0.0
  %723 = vmatprep.subr.mxu0 0.0
  %724 = vmatpush1.msra.mxu0 0.0
  %725 = vmatprep.subr.mxu0 0.0
  %726 = vmatpush1.msra.mxu0 0.0
  %727 = vmatprep.subr.mxu0 0.0
  %728 = vmatpush1.msra.mxu0 0.0
  %729 = vmatprep.subr.mxu0 0.0
  %730 = vmatpush1.msra.mxu0 0.0
  %731 = vmatprep.subr.mxu0 0.0
  %732 = vmatpush1.msra.mxu0 0.0
  %733 = vmatprep.subr.mxu0 0.0
  %734 = vmatpush1.msra.mxu0 0.0
  %735 = vmatprep.subr.mxu0 0.0
  %736 = vmatpush1.msra.mxu0 0.0
  %737 = vmatprep.subr.mxu0 0.0
  %738 = vmatpush1.msra.mxu0 0.0
  %739 = vmatprep.subr.mxu0 0.0
  %740 = vmatpush1.msra.mxu0 0.0
  %741 = vmatprep.subr.mxu0 0.0
  %742 = vmatpush1.msra.mxu0 0.0
  %743 = vmatprep.subr.mxu0 0.0
  %744 = vmatpush1.msra.mxu0 0.0
  %745 = vmatprep.subr.mxu0 0.0
  %746 = vmatpush1.msra.mxu0 0.0
  %747 = vmatprep.subr.mxu0 0.0
  %748 = vmatpush1.msra.mxu0 0.0
  %749 = vmatprep.subr.mxu0 0.0
  %750 = vmatpush1.msra.mxu0 0.0
  %751 = vmatprep.subr.mxu0 0.0
  %752 = vmatpush1.msra.mxu0 0.0
  %753 = vmatprep.subr.mxu0 0.0
  %754 = vmatpush1.msra.mxu0 0.0
  %755 = vmatprep.subr.mxu0 0.0
  %756 = vmatpush1.msra.mxu0 0.0
  %757 = vmatprep.subr.mxu0 0.0
  %758 = vmatpush1.msra.mxu0 0.0
  %759 = vmatprep.subr.mxu0 0.0
  %760 = vmatpush1.msra.mxu0 0.0
  %761 = vmatprep.subr.mxu0 0.0
  %762 = vmatpush1.msra.mxu0 0.0
  %763 = vmatprep.subr.mxu0 0.0
  %764 = vmatpush1.msra.mxu0 0.0
  %765 = vmatprep.subr.mxu0 0.0
  %766 = vmatpush1.msra.mxu0 0.0
  %767 = vmatprep.subr.mxu0 0.0
  %768 = vmatpush1.msra.mxu0 0.0
  %769 = vmatprep.subr.mxu0 0.0
  %770 = vmatpush1.msra.mxu0 0.0
  %771 = vmatprep.mubr.f32.mxu0 0.0
  %772 = vmatmul.mubr.f32.gmra.mrb[0].mxu0 %v702
  %v773 = vpop.f32.mrb[0].mxu0
  %v774 = vadd.f32 0.0, %v773
  %v775 = vpop.f32.mrb[0].mxu0
  %776 = vdwg.mxu0
  %777 = vrot.lane.b32.xlu0 %v287, 127
  %v778 = vpop.permute.xlu0 %777
  %s779 = vtos %v778
  %v780 = vstv %s779
  %v782 = vadd.f32 %v780, %v774
  %783 = vrot.lane.b32.xlu0 %v540, 119
  %v784 = vpop.permute.xlu0 %783
  %v786 = vmul.f32 %v540, %v784
  %788 = vrot.lane.b32.xlu0 %v786, 123
  %v789 = vpop.permute.xlu0 %788
  %v790 = vsel %vm209, %v789, 0
  %v793 = vsel %vm212, %v21, 0
  %795 = vmatprep.subr.mxu0 0.0
  %796 = vmatpush1.msra.mxu0 %v20
  %797 = vmatprep.subr.mxu0 0.0
  %798 = vmatpush1.msra.mxu0 %v793
  %799 = vmatprep.subr.mxu0 0.0
  %800 = vmatpush1.msra.mxu0 0.0
  %801 = vmatprep.subr.mxu0 0.0
  %802 = vmatpush1.msra.mxu0 0.0
  %803 = vmatprep.subr.mxu0 0.0
  %804 = vmatpush1.msra.mxu0 0.0
  %805 = vmatprep.subr.mxu0 0.0
  %806 = vmatpush1.msra.mxu0 0.0
  %807 = vmatprep.subr.mxu0 0.0
  %808 = vmatpush1.msra.mxu0 0.0
  %809 = vmatprep.subr.mxu0 0.0
  %810 = vmatpush1.msra.mxu0 0.0
  %811 = vmatprep.subr.mxu0 0.0
  %812 = vmatpush1.msra.mxu0 0.0
  %813 = vmatprep.subr.mxu0 0.0
  %814 = vmatpush1.msra.mxu0 0.0
  %815 = vmatprep.subr.mxu0 0.0
  %816 = vmatpush1.msra.mxu0 0.0
  %817 = vmatprep.subr.mxu0 0.0
  %818 = vmatpush1.msra.mxu0 0.0
  %819 = vmatprep.subr.mxu0 0.0
  %820 = vmatpush1.msra.mxu0 0.0
  %821 = vmatprep.subr.mxu0 0.0
  %822 = vmatpush1.msra.mxu0 0.0
  %823 = vmatprep.subr.mxu0 0.0
  %824 = vmatpush1.msra.mxu0 0.0
  %825 = vmatprep.subr.mxu0 0.0
  %826 = vmatpush1.msra.mxu0 0.0
  %827 = vmatprep.subr.mxu0 0.0
  %828 = vmatpush1.msra.mxu0 0.0
  %829 = vmatprep.subr.mxu0 0.0
  %830 = vmatpush1.msra.mxu0 0.0
  %831 = vmatprep.subr.mxu0 0.0
  %832 = vmatpush1.msra.mxu0 0.0
  %833 = vmatprep.subr.mxu0 0.0
  %834 = vmatpush1.msra.mxu0 0.0
  %835 = vmatprep.subr.mxu0 0.0
  %836 = vmatpush1.msra.mxu0 0.0
  %837 = vmatprep.subr.mxu0 0.0
  %838 = vmatpush1.msra.mxu0 0.0
  %839 = vmatprep.subr.mxu0 0.0
  %840 = vmatpush1.msra.mxu0 0.0
  %841 = vmatprep.subr.mxu0 0.0
  %842 = vmatpush1.msra.mxu0 0.0
  %843 = vmatprep.subr.mxu0 0.0
  %844 = vmatpush1.msra.mxu0 0.0
  %845 = vmatprep.subr.mxu0 0.0
  %846 = vmatpush1.msra.mxu0 0.0
  %847 = vmatprep.subr.mxu0 0.0
  %848 = vmatpush1.msra.mxu0 0.0
  %849 = vmatprep.subr.mxu0 0.0
  %850 = vmatpush1.msra.mxu0 0.0
  %851 = vmatprep.subr.mxu0 0.0
  %852 = vmatpush1.msra.mxu0 0.0
  %853 = vmatprep.subr.mxu0 0.0
  %854 = vmatpush1.msra.mxu0 0.0
  %855 = vmatprep.subr.mxu0 0.0
  %856 = vmatpush1.msra.mxu0 0.0
  %857 = vmatprep.subr.mxu0 0.0
  %858 = vmatpush1.msra.mxu0 0.0
  %859 = vmatprep.mubr.f32.mxu0 0.0
  %860 = vmatmul.mubr.f32.gmra.mrb[0].mxu0 %v790
  %v861 = vpop.f32.mrb[0].mxu0
  %v862 = vadd.f32 0.0, %v861
  %v863 = vpop.f32.mrb[0].mxu0
  %864 = vdwg.mxu0
  %v865 = vadd.f32 %v782, %v862
  %v867 = vsel %vm31, %v865, 0
  %v870 = vsel %vm31, %v626, 0
  %872 = vmatprep.subr.mxu0 0.0
  %873 = vmatpush1.xpose.msra.mxu0 %v870
  %874 = vmatprep.subr.mxu0 0.0
  %875 = vmatpush1.xpose.msra.mxu0 0.0
  %876 = vmatprep.subr.mxu0 0.0
  %877 = vmatpush1.xpose.msra.mxu0 0.0
  %878 = vmatprep.subr.mxu0 0.0
  %879 = vmatpush1.xpose.msra.mxu0 0.0
  %880 = vmatprep.subr.mxu0 0.0
  %881 = vmatpush1.xpose.msra.mxu0 0.0
  %882 = vmatprep.subr.mxu0 0.0
  %883 = vmatpush1.xpose.msra.mxu0 0.0
  %884 = vmatprep.subr.mxu0 0.0
  %885 = vmatpush1.xpose.msra.mxu0 0.0
  %886 = vmatprep.subr.mxu0 0.0
  %887 = vmatpush1.xpose.msra.mxu0 0.0
  %888 = vmatprep.subr.mxu0 0.0
  %889 = vmatpush1.xpose.msra.mxu0 0.0
  %890 = vmatprep.subr.mxu0 0.0
  %891 = vmatpush1.xpose.msra.mxu0 0.0
  %892 = vmatprep.subr.mxu0 0.0
  %893 = vmatpush1.xpose.msra.mxu0 0.0
  %894 = vmatprep.subr.mxu0 0.0
  %895 = vmatpush1.xpose.msra.mxu0 0.0
  %896 = vmatprep.subr.mxu0 0.0
  %897 = vmatpush1.xpose.msra.mxu0 0.0
  %898 = vmatprep.subr.mxu0 0.0
  %899 = vmatpush1.xpose.msra.mxu0 0.0
  %900 = vmatprep.subr.mxu0 0.0
  %901 = vmatpush1.xpose.msra.mxu0 0.0
  %902 = vmatprep.subr.mxu0 0.0
  %903 = vmatpush1.xpose.msra.mxu0 0.0
  %904 = vmatprep.subr.mxu0 0.0
  %905 = vmatpush1.xpose.msra.mxu0 0.0
  %906 = vmatprep.subr.mxu0 0.0
  %907 = vmatpush1.xpose.msra.mxu0 0.0
  %908 = vmatprep.subr.mxu0 0.0
  %909 = vmatpush1.xpose.msra.mxu0 0.0
  %910 = vmatprep.subr.mxu0 0.0
  %911 = vmatpush1.xpose.msra.mxu0 0.0
  %912 = vmatprep.subr.mxu0 0.0
  %913 = vmatpush1.xpose.msra.mxu0 0.0
  %914 = vmatprep.subr.mxu0 0.0
  %915 = vmatpush1.xpose.msra.mxu0 0.0
  %916 = vmatprep.subr.mxu0 0.0
  %917 = vmatpush1.xpose.msra.mxu0 0.0
  %918 = vmatprep.subr.mxu0 0.0
  %919 = vmatpush1.xpose.msra.mxu0 0.0
  %920 = vmatprep.subr.mxu0 0.0
  %921 = vmatpush1.xpose.msra.mxu0 0.0
  %922 = vmatprep.subr.mxu0 0.0
  %923 = vmatpush1.xpose.msra.mxu0 0.0
  %924 = vmatprep.subr.mxu0 0.0
  %925 = vmatpush1.xpose.msra.mxu0 0.0
  %926 = vmatprep.subr.mxu0 0.0
  %927 = vmatpush1.xpose.msra.mxu0 0.0
  %928 = vmatprep.subr.mxu0 0.0
  %929 = vmatpush1.xpose.msra.mxu0 0.0
  %930 = vmatprep.subr.mxu0 0.0
  %931 = vmatpush1.xpose.msra.mxu0 0.0
  %932 = vmatprep.subr.mxu0 0.0
  %933 = vmatpush1.xpose.msra.mxu0 0.0
  %934 = vmatprep.subr.mxu0 0.0
  %935 = vmatpush1.xpose.msra.mxu0 0.0
  %936 = vmatprep.mubr.f32.mxu0 0.0
  %937 = vmatmul.mubr.f32.gmra.mrb[0].mxu0 %v867
  %v938 = vpop.f32.mrb[0].mxu0
  %v939 = vadd.f32 0.0, %v938
  %v940 = vpop.f32.mrb[0].mxu0
  %941 = vdwg.mxu0
  %v942 = vmul.f32 %v939, 0.4472136
  %v943 = vsel %vm452, %v942, -inf
  %944 = vmax.xlane.f32.xlu0 %v943
  %v945 = vpop.xlane.xlu0 %944
  %v946 = vsub.f32 %v942, %v945
  %v947 = vmul.f32 %v946, 1.442695
  %v948 = vpow.pop %v947
  %v949 = vsel %vm452, %v948, 0.0
  %950 = vadd.xlane.f32.xlu0 %v949
  %v951 = vpop.xlane.xlu0 %950
  %v952 = vadd.f32 %v951, 1.0
  %v953 = vrcp.pop %v952
  %v954 = vmul.f32 %v948, %v953
  %v956 = vsel %vm452, %v954, 0
  %958 = vmatprep.subr.mxu0 0.0
  %959 = vmatpush1.msra.mxu0 %v696
  %960 = vmatprep.subr.mxu0 0.0
  %961 = vmatpush1.msra.mxu0 0.0
  %962 = vmatprep.subr.mxu0 0.0
  %963 = vmatpush1.msra.mxu0 0.0
  %964 = vmatprep.subr.mxu0 0.0
  %965 = vmatpush1.msra.mxu0 0.0
  %966 = vmatprep.subr.mxu0 0.0
  %967 = vmatpush1.msra.mxu0 0.0
  %968 = vmatprep.subr.mxu0 0.0
  %969 = vmatpush1.msra.mxu0 0.0
  %970 = vmatprep.subr.mxu0 0.0
  %971 = vmatpush1.msra.mxu0 0.0
  %972 = vmatprep.subr.mxu0 0.0
  %973 = vmatpush1.msra.mxu0 0.0
  %974 = vmatprep.subr.mxu0 0.0
  %975 = vmatpush1.msra.mxu0 0.0
  %976 = vmatprep.subr.mxu0 0.0
  %977 = vmatpush1.msra.mxu0 0.0
  %978 = vmatprep.subr.mxu0 0.0
  %979 = vmatpush1.msra.mxu0 0.0
  %980 = vmatprep.subr.mxu0 0.0
  %981 = vmatpush1.msra.mxu0 0.0
  %982 = vmatprep.subr.mxu0 0.0
  %983 = vmatpush1.msra.mxu0 0.0
  %984 = vmatprep.subr.mxu0 0.0
  %985 = vmatpush1.msra.mxu0 0.0
  %986 = vmatprep.subr.mxu0 0.0
  %987 = vmatpush1.msra.mxu0 0.0
  %988 = vmatprep.subr.mxu0 0.0
  %989 = vmatpush1.msra.mxu0 0.0
  %990 = vmatprep.subr.mxu0 0.0
  %991 = vmatpush1.msra.mxu0 0.0
  %992 = vmatprep.subr.mxu0 0.0
  %993 = vmatpush1.msra.mxu0 0.0
  %994 = vmatprep.subr.mxu0 0.0
  %995 = vmatpush1.msra.mxu0 0.0
  %996 = vmatprep.subr.mxu0 0.0
  %997 = vmatpush1.msra.mxu0 0.0
  %998 = vmatprep.subr.mxu0 0.0
  %999 = vmatpush1.msra.mxu0 0.0
  %1000 = vmatprep.subr.mxu0 0.0
  %1001 = vmatpush1.msra.mxu0 0.0
  %1002 = vmatprep.subr.mxu0 0.0
  %1003 = vmatpush1.msra.mxu0 0.0
  %1004 = vmatprep.subr.mxu0 0.0
  %1005 = vmatpush1.msra.mxu0 0.0
  %1006 = vmatprep.subr.mxu0 0.0
  %1007 = vmatpush1.msra.mxu0 0.0
  %1008 = vmatprep.subr.mxu0 0.0
  %1009 = vmatpush1.msra.mxu0 0.0
  %1010 = vmatprep.subr.mxu0 0.0
  %1011 = vmatpush1.msra.mxu0 0.0
  %1012 = vmatprep.subr.mxu0 0.0
  %1013 = vmatpush1.msra.mxu0 0.0
  %1014 = vmatprep.subr.mxu0 0.0
  %1015 = vmatpush1.msra.mxu0 0.0
  %1016 = vmatprep.subr.mxu0 0.0
  %1017 = vmatpush1.msra.mxu0 0.0
  %1018 = vmatprep.subr.mxu0 0.0
  %1019 = vmatpush1.msra.mxu0 0.0
  %1020 = vmatprep.subr.mxu0 0.0
  %1021 = vmatpush1.msra.mxu0 0.0
  %1022 = vmatprep.mubr.f32.mxu0 0.0
  %1023 = vmatmul.mubr.f32.gmra.mrb[0].mxu0 %v956
  %v1024 = vpop.f32.mrb[0].mxu0
  %v1025 = vadd.f32 %v555, %v1024
  %v1026 = vpop.f32.mrb[0].mxu0
  %1027 = vdwg.mxu0
  %v1028 = vld [vmem:[%s0] sm:$0xff]
  %v1029 = vld [vmem:[%s0 + $0x8] sm:$0xff]
  %v1030 = vld [vmem:[%s0 + $0x10] sm:$0xff]
  %v1031 = vld [vmem:[%s0 + $0x18] sm:$0xff]
  %v1032 = vld [vmem:[%s0 + $0x20] sm:$0xff]
  %v1033 = vld [vmem:[%s0 + $0x28] sm:$0xff]
  %v1034 = vld [vmem:[%s0 + $0x30] sm:$0xff]
  %v1035 = vld [vmem:[%s0 + $0x38] sm:$0xff]
  %v1036 = vld [vmem:[%s0 + $0x40] sm:$0xff]
  %v1037 = vld [vmem:[%s0 + $0x48] sm:$0xff]
  %v1038 = vld [vmem:[%s0 + $0x50] sm:$0xff]
  %v1039 = vld [vmem:[%s0 + $0x58] sm:$0xff]
  %v1040 = vlaneseq
  %v1041 = vand.u32 %v1040, 127
  %1042 = vset.pattern.permute.xlu0 0
  %1043 = vperm.xlu0 %1042, %v1028
  %v1044 = vpop.permute.xlu0 %1043
  %1045 = vset.pattern.permute.xlu0 0
  %1046 = vperm.xlu0 %1045, %v1029
  %v1047 = vpop.permute.xlu0 %1046
  %1048 = vset.pattern.permute.xlu0 0
  %1049 = vperm.xlu0 %1048, %v1030
  %v1050 = vpop.permute.xlu0 %1049
  %1051 = vset.pattern.permute.xlu0 0
  %1052 = vperm.xlu0 %1051, %v1031
  %v1053 = vpop.permute.xlu0 %1052
  %1054 = vset.pattern.permute.xlu0 0
  %1055 = vperm.xlu0 %1054, %v1032
  %v1056 = vpop.permute.xlu0 %1055
  %1057 = vset.pattern.permute.xlu0 0
  %1058 = vperm.xlu0 %1057, %v1033
  %v1059 = vpop.permute.xlu0 %1058
  %1060 = vset.pattern.permute.xlu0 0
  %1061 = vperm.xlu0 %1060, %v1034
  %v1062 = vpop.permute.xlu0 %1061
  %1063 = vset.pattern.permute.xlu0 0
  %1064 = vperm.xlu0 %1063, %v1035
  %v1065 = vpop.permute.xlu0 %1064
  %1066 = vset.pattern.permute.xlu0 0
  %1067 = vperm.xlu0 %1066, %v1036
  %v1068 = vpop.permute.xlu0 %1067
  %1069 = vset.pattern.permute.xlu0 0
  %1070 = vperm.xlu0 %1069, %v1037
  %v1071 = vpop.permute.xlu0 %1070
  %1072 = vset.pattern.permute.xlu0 0
  %1073 = vperm.xlu0 %1072, %v1038
  %v1074 = vpop.permute.xlu0 %1073
  %1075 = vset.pattern.permute.xlu0 0
  %1076 = vperm.xlu0 %1075, %v1039
  %v1077 = vpop.permute.xlu0 %1076
  %vm1078 = vcmp.eq.s32.totalorder %v1044, %v1041
  %vm1079 = vcmp.eq.s32.totalorder %v1047, %v1041
  %vm1080 = vcmp.eq.s32.totalorder %v1050, %v1041
  %vm1081 = vcmp.eq.s32.totalorder %v1053, %v1041
  %vm1082 = vcmp.eq.s32.totalorder %v1056, %v1041
  %vm1083 = vcmp.eq.s32.totalorder %v1059, %v1041
  %vm1084 = vcmp.eq.s32.totalorder %v1062, %v1041
  %vm1085 = vcmp.eq.s32.totalorder %v1065, %v1041
  %vm1086 = vcmp.eq.s32.totalorder %v1068, %v1041
  %vm1087 = vcmp.eq.s32.totalorder %v1071, %v1041
  %vm1088 = vcmp.eq.s32.totalorder %v1074, %v1041
  %vm1089 = vcmp.eq.s32.totalorder %v1077, %v1041
  %v1090 = vsel %vm1078, 1, 0
  %v1091 = vsel %vm1079, 1, 0
  %v1092 = vsel %vm1080, 1, 0
  %v1093 = vsel %vm1081, 1, 0
  %v1094 = vsel %vm1082, 1, 0
  %v1095 = vsel %vm1083, 1, 0
  %v1096 = vsel %vm1084, 1, 0
  %v1097 = vsel %vm1085, 1, 0
  %v1098 = vsel %vm1086, 1, 0
  %v1099 = vsel %vm1087, 1, 0
  %v1100 = vsel %vm1088, 1, 0
  %v1101 = vsel %vm1089, 1, 0
  %v1102 = vcvt.s32.f32 %v1090
  %v1103 = vcvt.s32.f32 %v1091
  %v1104 = vcvt.s32.f32 %v1092
  %v1105 = vcvt.s32.f32 %v1093
  %v1106 = vcvt.s32.f32 %v1094
  %v1107 = vcvt.s32.f32 %v1095
  %v1108 = vcvt.s32.f32 %v1096
  %v1109 = vcvt.s32.f32 %v1097
  %v1110 = vcvt.s32.f32 %v1098
  %v1111 = vcvt.s32.f32 %v1099
  %v1112 = vcvt.s32.f32 %v1100
  %v1113 = vcvt.s32.f32 %v1101
  %vm1114 = vcmask 130048
  %v1116 = vsel %vm1114, %v1102, 0
  %v1119 = vsel %vm1114, %v1103, 0
  %v1122 = vsel %vm1114, %v1104, 0
  %v1125 = vsel %vm1114, %v1105, 0
  %v1128 = vsel %vm1114, %v1106, 0
  %v1131 = vsel %vm1114, %v1107, 0
  %v1134 = vsel %vm1114, %v1108, 0
  %v1137 = vsel %vm1114, %v1109, 0
  %v1140 = vsel %vm1114, %v1110, 0
  %v1143 = vsel %vm1114, %v1111, 0
  %v1146 = vsel %vm1114, %v1112, 0
  %v1149 = vsel %vm1114, %v1113, 0
  %1151 = vmatprep.subr.mxu0 0.0
  %1152 = vmatpush1.msra.mxu0 %v535
  %1153 = vmatprep.subr.mxu0 0.0
  %1154 = vmatpush1.msra.mxu0 %v1025
  %1155 = vmatprep.subr.mxu0 0.0
  %1156 = vmatpush1.msra.mxu0 0.0
  %1157 = vmatprep.subr.mxu0 0.0
  %1158 = vmatpush1.msra.mxu0 0.0
  %1159 = vmatprep.subr.mxu0 0.0
  %1160 = vmatpush1.msra.mxu0 0.0
  %1161 = vmatprep.subr.mxu0 0.0
  %1162 = vmatpush1.msra.mxu0 0.0
  %1163 = vmatprep.subr.mxu0 0.0
  %1164 = vmatpush1.msra.mxu0 0.0
  %1165 = vmatprep.subr.mxu0 0.0
  %1166 = vmatpush1.msra.mxu0 0.0
  %1167 = vmatprep.subr.mxu0 0.0
  %1168 = vmatpush1.msra.mxu0 0.0
  %1169 = vmatprep.subr.mxu0 0.0
  %1170 = vmatpush1.msra.mxu0 0.0
  %1171 = vmatprep.subr.mxu0 0.0
  %1172 = vmatpush1.msra.mxu0 0.0
  %1173 = vmatprep.subr.mxu0 0.0
  %1174 = vmatpush1.msra.mxu0 0.0
  %1175 = vmatprep.subr.mxu0 0.0
  %1176 = vmatpush1.msra.mxu0 0.0
  %1177 = vmatprep.subr.mxu0 0.0
  %1178 = vmatpush1.msra.mxu0 0.0
  %1179 = vmatprep.subr.mxu0 0.0
  %1180 = vmatpush1.msra.mxu0 0.0
  %1181 = vmatprep.subr.mxu0 0.0
  %1182 = vmatpush1.msra.mxu0 0.0
  %1183 = vmatprep.subr.mxu0 0.0
  %1184 = vmatpush1.msra.mxu0 0.0
  %1185 = vmatprep.subr.mxu0 0.0
  %1186 = vmatpush1.msra.mxu0 0.0
  %1187 = vmatprep.subr.mxu0 0.0
  %1188 = vmatpush1.msra.mxu0 0.0
  %1189 = vmatprep.subr.mxu0 0.0
  %1190 = vmatpush1.msra.mxu0 0.0
  %1191 = vmatprep.subr.mxu0 0.0
  %1192 = vmatpush1.msra.mxu0 0.0
  %1193 = vmatprep.subr.mxu0 0.0
  %1194 = vmatpush1.msra.mxu0 0.0
  %1195 = vmatprep.subr.mxu0 0.0
  %1196 = vmatpush1.msra.mxu0 0.0
  %1197 = vmatprep.subr.mxu0 0.0
  %1198 = vmatpush1.msra.mxu0 0.0
  %1199 = vmatprep.subr.mxu0 0.0
  %1200 = vmatpush1.msra.mxu0 0.0
  %1201 = vmatprep.subr.mxu0 0.0
  %1202 = vmatpush1.msra.mxu0 0.0
  %1203 = vmatprep.subr.mxu0 0.0
  %1204 = vmatpush1.msra.mxu0 0.0
  %1205 = vmatprep.subr.mxu0 0.0
  %1206 = vmatpush1.msra.mxu0 0.0
  %1207 = vmatprep.subr.mxu0 0.0
  %1208 = vmatpush1.msra.mxu0 0.0
  %1209 = vmatprep.subr.mxu0 0.0
  %1210 = vmatpush1.msra.mxu0 0.0
  %1211 = vmatprep.subr.mxu0 0.0
  %1212 = vmatpush1.msra.mxu0 0.0
  %1213 = vmatprep.subr.mxu0 0.0
  %1214 = vmatpush1.msra.mxu0 0.0
  %1215 = vmatprep.mubr.f32.mxu0 0.0
  %1216 = vmatmul.mubr.f32.gmra.mrb[0].mxu0 %v1116
  %v1217 = vpop.f32.mrb[0].mxu0
  %v1218 = vadd.f32 0.0, %v1217
  %v1219 = vpop.f32.mrb[0].mxu0
  %1220 = vmatprep.mubr.f32.mxu0 0.0
  %1221 = vmatmul.mubr.f32.gmra.mrb[0].mxu0 %v1119
  %v1222 = vpop.f32.mrb[0].mxu0
  %v1223 = vadd.f32 0.0, %v1222
  %v1224 = vpop.f32.mrb[0].mxu0
  %1225 = vmatprep.mubr.f32.mxu0 0.0
  %1226 = vmatmul.mubr.f32.gmra.mrb[0].mxu0 %v1122
  %v1227 = vpop.f32.mrb[0].mxu0
  %v1228 = vadd.f32 0.0, %v1227
  %v1229 = vpop.f32.mrb[0].mxu0
  %1230 = vmatprep.mubr.f32.mxu0 0.0
  %1231 = vmatmul.mubr.f32.gmra.mrb[0].mxu0 %v1125
  %v1232 = vpop.f32.mrb[0].mxu0
  %v1233 = vadd.f32 0.0, %v1232
  %v1234 = vpop.f32.mrb[0].mxu0
  %1235 = vmatprep.mubr.f32.mxu0 0.0
  %1236 = vmatmul.mubr.f32.gmra.mrb[0].mxu0 %v1128
  %v1237 = vpop.f32.mrb[0].mxu0
  %v1238 = vadd.f32 0.0, %v1237
  %v1239 = vpop.f32.mrb[0].mxu0
  %1240 = vmatprep.mubr.f32.mxu0 0.0
  %1241 = vmatmul.mubr.f32.gmra.mrb[0].mxu0 %v1131
  %v1242 = vpop.f32.mrb[0].mxu0
  %v1243 = vadd.f32 0.0, %v1242
  %v1244 = vpop.f32.mrb[0].mxu0
  %1245 = vmatprep.mubr.f32.mxu0 0.0
  %1246 = vmatmul.mubr.f32.gmra.mrb[0].mxu0 %v1134
  %v1247 = vpop.f32.mrb[0].mxu0
  %v1248 = vadd.f32 0.0, %v1247
  %v1249 = vpop.f32.mrb[0].mxu0
  %1250 = vmatprep.mubr.f32.mxu0 0.0
  %1251 = vmatmul.mubr.f32.gmra.mrb[0].mxu0 %v1137
  %v1252 = vpop.f32.mrb[0].mxu0
  %v1253 = vadd.f32 0.0, %v1252
  %v1254 = vpop.f32.mrb[0].mxu0
  %1255 = vmatprep.mubr.f32.mxu0 0.0
  %1256 = vmatmul.mubr.f32.gmra.mrb[0].mxu0 %v1140
  %v1257 = vpop.f32.mrb[0].mxu0
  %v1258 = vadd.f32 0.0, %v1257
  %v1259 = vpop.f32.mrb[0].mxu0
  %1260 = vmatprep.mubr.f32.mxu0 0.0
  %1261 = vmatmul.mubr.f32.gmra.mrb[0].mxu0 %v1143
  %v1262 = vpop.f32.mrb[0].mxu0
  %v1263 = vadd.f32 0.0, %v1262
  %v1264 = vpop.f32.mrb[0].mxu0
  %1265 = vmatprep.mubr.f32.mxu0 0.0
  %1266 = vmatmul.mubr.f32.gmra.mrb[0].mxu0 %v1146
  %v1267 = vpop.f32.mrb[0].mxu0
  %v1268 = vadd.f32 0.0, %v1267
  %v1269 = vpop.f32.mrb[0].mxu0
  %1270 = vmatprep.mubr.f32.mxu0 0.0
  %1271 = vmatmul.mubr.f32.gmra.mrb[0].mxu0 %v1149
  %v1272 = vpop.f32.mrb[0].mxu0
  %v1273 = vadd.f32 0.0, %v1272
  %v1274 = vpop.f32.mrb[0].mxu0
  %1275 = vdwg.mxu0
  %v1276 = vlaneseq
  %v1277 = vshrl.u32 %v1276, 7
  %v1278 = vsub.s32 0, %v1277
  %v1279 = vrot.slane %v27, %v1278
  %v1281 = vsel %vm31, %v1218, 0
  %v1284 = vsel %vm31, %v1223, 0
  %v1287 = vsel %vm31, %v1228, 0
  %v1290 = vsel %vm31, %v1233, 0
  %v1293 = vsel %vm31, %v1238, 0
  %v1296 = vsel %vm31, %v1243, 0
  %v1299 = vsel %vm31, %v1248, 0
  %v1302 = vsel %vm31, %v1253, 0
  %v1305 = vsel %vm31, %v1258, 0
  %v1308 = vsel %vm31, %v1263, 0
  %v1311 = vsel %vm31, %v1268, 0
  %v1314 = vsel %vm31, %v1273, 0
  %v1317 = vsel %vm59, %v25, 0
  %1319 = vmatprep.subr.mxu0 0.0
  %1320 = vmatpush1.msra.mxu0 %v1317
  %1321 = vmatprep.subr.mxu0 0.0
  %1322 = vmatpush1.msra.mxu0 0.0
  %1323 = vmatprep.subr.mxu0 0.0
  %1324 = vmatpush1.msra.mxu0 0.0
  %1325 = vmatprep.subr.mxu0 0.0
  %1326 = vmatpush1.msra.mxu0 0.0
  %1327 = vmatprep.subr.mxu0 0.0
  %1328 = vmatpush1.msra.mxu0 0.0
  %1329 = vmatprep.subr.mxu0 0.0
  %1330 = vmatpush1.msra.mxu0 0.0
  %1331 = vmatprep.subr.mxu0 0.0
  %1332 = vmatpush1.msra.mxu0 0.0
  %1333 = vmatprep.subr.mxu0 0.0
  %1334 = vmatpush1.msra.mxu0 0.0
  %1335 = vmatprep.subr.mxu0 0.0
  %1336 = vmatpush1.msra.mxu0 0.0
  %1337 = vmatprep.subr.mxu0 0.0
  %1338 = vmatpush1.msra.mxu0 0.0
  %1339 = vmatprep.subr.mxu0 0.0
  %1340 = vmatpush1.msra.mxu0 0.0
  %1341 = vmatprep.subr.mxu0 0.0
  %1342 = vmatpush1.msra.mxu0 0.0
  %1343 = vmatprep.subr.mxu0 0.0
  %1344 = vmatpush1.msra.mxu0 0.0
  %1345 = vmatprep.subr.mxu0 0.0
  %1346 = vmatpush1.msra.mxu0 0.0
  %1347 = vmatprep.subr.mxu0 0.0
  %1348 = vmatpush1.msra.mxu0 0.0
  %1349 = vmatprep.subr.mxu0 0.0
  %1350 = vmatpush1.msra.mxu0 0.0
  %1351 = vmatprep.subr.mxu0 0.0
  %1352 = vmatpush1.msra.mxu0 0.0
  %1353 = vmatprep.subr.mxu0 0.0
  %1354 = vmatpush1.msra.mxu0 0.0
  %1355 = vmatprep.subr.mxu0 0.0
  %1356 = vmatpush1.msra.mxu0 0.0
  %1357 = vmatprep.subr.mxu0 0.0
  %1358 = vmatpush1.msra.mxu0 0.0
  %1359 = vmatprep.subr.mxu0 0.0
  %1360 = vmatpush1.msra.mxu0 0.0
  %1361 = vmatprep.subr.mxu0 0.0
  %1362 = vmatpush1.msra.mxu0 0.0
  %1363 = vmatprep.subr.mxu0 0.0
  %1364 = vmatpush1.msra.mxu0 0.0
  %1365 = vmatprep.subr.mxu0 0.0
  %1366 = vmatpush1.msra.mxu0 0.0
  %1367 = vmatprep.subr.mxu0 0.0
  %1368 = vmatpush1.msra.mxu0 0.0
  %1369 = vmatprep.subr.mxu0 0.0
  %1370 = vmatpush1.msra.mxu0 0.0
  %1371 = vmatprep.subr.mxu0 0.0
  %1372 = vmatpush1.msra.mxu0 0.0
  %1373 = vmatprep.subr.mxu0 0.0
  %1374 = vmatpush1.msra.mxu0 0.0
  %1375 = vmatprep.subr.mxu0 0.0
  %1376 = vmatpush1.msra.mxu0 0.0
  %1377 = vmatprep.subr.mxu0 0.0
  %1378 = vmatpush1.msra.mxu0 0.0
  %1379 = vmatprep.subr.mxu0 0.0
  %1380 = vmatpush1.msra.mxu0 0.0
  %1381 = vmatprep.subr.mxu0 0.0
  %1382 = vmatpush1.msra.mxu0 0.0
  %1383 = vmatprep.mubr.f32.mxu0 0.0
  %1384 = vmatmul.mubr.f32.gmra.mrb[0].mxu0 %v1281
  %v1385 = vpop.f32.mrb[0].mxu0
  %v1386 = vadd.f32 %v1279, %v1385
  %v1387 = vpop.f32.mrb[0].mxu0
  %1388 = vmatprep.mubr.f32.mxu0 0.0
  %1389 = vmatmul.mubr.f32.gmra.mrb[0].mxu0 %v1284
  %v1390 = vpop.f32.mrb[0].mxu0
  %v1391 = vadd.f32 %v1279, %v1390
  %v1392 = vpop.f32.mrb[0].mxu0
  %1393 = vmatprep.mubr.f32.mxu0 0.0
  %1394 = vmatmul.mubr.f32.gmra.mrb[0].mxu0 %v1287
  %v1395 = vpop.f32.mrb[0].mxu0
  %v1396 = vadd.f32 %v1279, %v1395
  %v1397 = vpop.f32.mrb[0].mxu0
  %1398 = vmatprep.mubr.f32.mxu0 0.0
  %1399 = vmatmul.mubr.f32.gmra.mrb[0].mxu0 %v1290
  %v1400 = vpop.f32.mrb[0].mxu0
  %v1401 = vadd.f32 %v1279, %v1400
  %v1402 = vpop.f32.mrb[0].mxu0
  %1403 = vmatprep.mubr.f32.mxu0 0.0
  %1404 = vmatmul.mubr.f32.gmra.mrb[0].mxu0 %v1293
  %v1405 = vpop.f32.mrb[0].mxu0
  %v1406 = vadd.f32 %v1279, %v1405
  %v1407 = vpop.f32.mrb[0].mxu0
  %1408 = vmatprep.mubr.f32.mxu0 0.0
  %1409 = vmatmul.mubr.f32.gmra.mrb[0].mxu0 %v1296
  %v1410 = vpop.f32.mrb[0].mxu0
  %v1411 = vadd.f32 %v1279, %v1410
  %v1412 = vpop.f32.mrb[0].mxu0
  %1413 = vmatprep.mubr.f32.mxu0 0.0
  %1414 = vmatmul.mubr.f32.gmra.mrb[0].mxu0 %v1299
  %v1415 = vpop.f32.mrb[0].mxu0
  %v1416 = vadd.f32 %v1279, %v1415
  %v1417 = vpop.f32.mrb[0].mxu0
  %1418 = vmatprep.mubr.f32.mxu0 0.0
  %1419 = vmatmul.mubr.f32.gmra.mrb[0].mxu0 %v1302
  %v1420 = vpop.f32.mrb[0].mxu0
  %v1421 = vadd.f32 %v1279, %v1420
  %v1422 = vpop.f32.mrb[0].mxu0
  %1423 = vmatprep.mubr.f32.mxu0 0.0
  %1424 = vmatmul.mubr.f32.gmra.mrb[0].mxu0 %v1305
  %v1425 = vpop.f32.mrb[0].mxu0
  %v1426 = vadd.f32 %v1279, %v1425
  %v1427 = vpop.f32.mrb[0].mxu0
  %1428 = vmatprep.mubr.f32.mxu0 0.0
  %1429 = vmatmul.mubr.f32.gmra.mrb[0].mxu0 %v1308
  %v1430 = vpop.f32.mrb[0].mxu0
  %v1431 = vadd.f32 %v1279, %v1430
  %v1432 = vpop.f32.mrb[0].mxu0
  %1433 = vmatprep.mubr.f32.mxu0 0.0
  %1434 = vmatmul.mubr.f32.gmra.mrb[0].mxu0 %v1311
  %v1435 = vpop.f32.mrb[0].mxu0
  %v1436 = vadd.f32 %v1279, %v1435
  %v1437 = vpop.f32.mrb[0].mxu0
  %1438 = vmatprep.mubr.f32.mxu0 0.0
  %1439 = vmatmul.mubr.f32.gmra.mrb[0].mxu0 %v1314
  %v1440 = vpop.f32.mrb[0].mxu0
  %v1441 = vadd.f32 %v1279, %v1440
  %v1442 = vpop.f32.mrb[0].mxu0
  %1443 = vdwg.mxu0
  %v1444 = vxor.u32 %v1386, 2147483648
  %v1445 = vxor.u32 %v1391, 2147483648
  %v1446 = vxor.u32 %v1396, 2147483648
  %v1447 = vmul.f32 %v1444, 1.442695
  %v1448 = vpow.pop %v1447
  %v1449 = vmul.f32 %v1445, 1.442695
  %v1450 = vpow.pop %v1449
  %v1451 = vmul.f32 %v1446, 1.442695
  %v1452 = vpow.pop %v1451
  %v1453 = vadd.f32 %v1448, 1.0
  %v1454 = vadd.f32 %v1450, 1.0
  %v1455 = vadd.f32 %v1452, 1.0
  %v1456 = vrcp.pop %v1453
  %v1457 = vmul.f32 1.0, %v1456
  %v1458 = vrcp.pop %v1454
  %v1459 = vmul.f32 1.0, %v1458
  %v1460 = vrcp.pop %v1455
  %v1461 = vmul.f32 1.0, %v1460
  %v1462 = vtanh.pop %v1386
  %v1463 = vtanh.pop %v1391
  %v1464 = vtanh.pop %v1396
  %v1465 = vmul.f32 %v1457, 0.0
  %v1466 = vmul.f32 %v1459, 0.0
  %v1467 = vmul.f32 %v1461, 0.0
  %1471 = vrot.lane.b32.xlu0 %v1462, 118
  %v1472 = vpop.permute.xlu0 %1471
  %1473 = vrot.lane.b32.xlu0 %v1463, 118
  %v1474 = vpop.permute.xlu0 %1473
  %1475 = vrot.lane.b32.xlu0 %v1464, 118
  %v1476 = vpop.permute.xlu0 %1475
  %v1480 = vmul.f32 %v1457, %v1472
  %v1481 = vmul.f32 %v1459, %v1474
  %v1482 = vmul.f32 %v1461, %v1476
  %1486 = vrot.lane.b32.xlu0 %v1480, 5
  %v1487 = vpop.permute.xlu0 %1486
  %1488 = vrot.lane.b32.xlu0 %v1481, 5
  %v1489 = vpop.permute.xlu0 %1488
  %1490 = vrot.lane.b32.xlu0 %v1482, 5
  %v1491 = vpop.permute.xlu0 %1490
  %v1495 = vadd.f32 %v1465, %v1487
  %v1496 = vadd.f32 %v1466, %v1489
  %v1497 = vadd.f32 %v1467, %v1491
  %v1498 = vtanh.pop %v1495
  %v1499 = vtanh.pop %v1496
  %v1500 = vtanh.pop %v1497
  %1504 = vrot.lane.b32.xlu0 %v1498, 10
  %v1505 = vpop.permute.xlu0 %1504
  %1506 = vrot.lane.b32.xlu0 %v1499, 10
  %v1507 = vpop.permute.xlu0 %1506
  %1508 = vrot.lane.b32.xlu0 %v1500, 10
  %v1509 = vpop.permute.xlu0 %1508
  %v1513 = vmul.f32 %v1457, %v1505
  %v1514 = vmul.f32 %v1459, %v1507
  %v1515 = vmul.f32 %v1461, %v1509
  %1519 = vrot.lane.b32.xlu0 %v1513, 113
  %v1520 = vpop.permute.xlu0 %1519
  %1521 = vrot.lane.b32.xlu0 %v1514, 113
  %v1522 = vpop.permute.xlu0 %1521
  %1523 = vrot.lane.b32.xlu0 %v1515, 113
  %v1524 = vpop.permute.xlu0 %1523
  %v1525 = vsel %vm31, %v1520, 0
  %v1527 = vsel %vm31, %v1522, 0
  %v1529 = vsel %vm31, %v1524, 0
  %v1532 = vsel %vm59, %v26, 0
  %1534 = vmatprep.subr.mxu0 0.0
  %1535 = vmatpush1.msra.mxu0 %v1532
  %1536 = vmatprep.subr.mxu0 0.0
  %1537 = vmatpush1.msra.mxu0 0.0
  %1538 = vmatprep.subr.mxu0 0.0
  %1539 = vmatpush1.msra.mxu0 0.0
  %1540 = vmatprep.subr.mxu0 0.0
  %1541 = vmatpush1.msra.mxu0 0.0
  %1542 = vmatprep.subr.mxu0 0.0
  %1543 = vmatpush1.msra.mxu0 0.0
  %1544 = vmatprep.subr.mxu0 0.0
  %1545 = vmatpush1.msra.mxu0 0.0
  %1546 = vmatprep.subr.mxu0 0.0
  %1547 = vmatpush1.msra.mxu0 0.0
  %1548 = vmatprep.subr.mxu0 0.0
  %1549 = vmatpush1.msra.mxu0 0.0
  %1550 = vmatprep.subr.mxu0 0.0
  %1551 = vmatpush1.msra.mxu0 0.0
  %1552 = vmatprep.subr.mxu0 0.0
  %1553 = vmatpush1.msra.mxu0 0.0
  %1554 = vmatprep.subr.mxu0 0.0
  %1555 = vmatpush1.msra.mxu0 0.0
  %1556 = vmatprep.subr.mxu0 0.0
  %1557 = vmatpush1.msra.mxu0 0.0
  %1558 = vmatprep.subr.mxu0 0.0
  %1559 = vmatpush1.msra.mxu0 0.0
  %1560 = vmatprep.subr.mxu0 0.0
  %1561 = vmatpush1.msra.mxu0 0.0
  %1562 = vmatprep.subr.mxu0 0.0
  %1563 = vmatpush1.msra.mxu0 0.0
  %1564 = vmatprep.subr.mxu0 0.0
  %1565 = vmatpush1.msra.mxu0 0.0
  %1566 = vmatprep.subr.mxu0 0.0
  %1567 = vmatpush1.msra.mxu0 0.0
  %1568 = vmatprep.subr.mxu0 0.0
  %1569 = vmatpush1.msra.mxu0 0.0
  %1570 = vmatprep.subr.mxu0 0.0
  %1571 = vmatpush1.msra.mxu0 0.0
  %1572 = vmatprep.subr.mxu0 0.0
  %1573 = vmatpush1.msra.mxu0 0.0
  %1574 = vmatprep.subr.mxu0 0.0
  %1575 = vmatpush1.msra.mxu0 0.0
  %1576 = vmatprep.subr.mxu0 0.0
  %1577 = vmatpush1.msra.mxu0 0.0
  %1578 = vmatprep.subr.mxu0 0.0
  %1579 = vmatpush1.msra.mxu0 0.0
  %1580 = vmatprep.subr.mxu0 0.0
  %1581 = vmatpush1.msra.mxu0 0.0
  %1582 = vmatprep.subr.mxu0 0.0
  %1583 = vmatpush1.msra.mxu0 0.0
  %1584 = vmatprep.subr.mxu0 0.0
  %1585 = vmatpush1.msra.mxu0 0.0
  %1586 = vmatprep.subr.mxu0 0.0
  %1587 = vmatpush1.msra.mxu0 0.0
  %1588 = vmatprep.subr.mxu0 0.0
  %1589 = vmatpush1.msra.mxu0 0.0
  %1590 = vmatprep.subr.mxu0 0.0
  %1591 = vmatpush1.msra.mxu0 0.0
  %1592 = vmatprep.subr.mxu0 0.0
  %1593 = vmatpush1.msra.mxu0 0.0
  %1594 = vmatprep.subr.mxu0 0.0
  %1595 = vmatpush1.msra.mxu0 0.0
  %1596 = vmatprep.subr.mxu0 0.0
  %1597 = vmatpush1.msra.mxu0 0.0
  %1598 = vmatprep.mubr.f32.mxu0 0.0
  %1599 = vmatmul.mubr.f32.gmra.mrb[0].mxu0 %v1525
  %v1600 = vpop.f32.mrb[0].mxu0
  %v1601 = vadd.f32 0.0, %v1600
  %v1602 = vpop.f32.mrb[0].mxu0
  %1603 = vmatprep.mubr.f32.mxu0 0.0
  %1604 = vmatmul.mubr.f32.gmra.mrb[0].mxu0 %v1527
  %v1605 = vpop.f32.mrb[0].mxu0
  %v1606 = vadd.f32 0.0, %v1605
  %v1607 = vpop.f32.mrb[0].mxu0
  %1608 = vmatprep.mubr.f32.mxu0 0.0
  %1609 = vmatmul.mubr.f32.gmra.mrb[0].mxu0 %v1529
  %v1610 = vpop.f32.mrb[0].mxu0
  %v1611 = vadd.f32 0.0, %v1610
  %v1612 = vpop.f32.mrb[0].mxu0
  %1613 = vdwg.mxu0
  %v1614 = vadd.f32 %v1401, %v1601
  %v1615 = vadd.f32 %v1406, %v1606
  %v1616 = vadd.f32 %v1411, %v1611
  %v1617 = vxor.u32 %v1614, 2147483648
  %v1618 = vxor.u32 %v1615, 2147483648
  %v1619 = vxor.u32 %v1616, 2147483648
  %v1620 = vmul.f32 %v1617, 1.442695
  %v1621 = vpow.pop %v1620
  %v1622 = vmul.f32 %v1618, 1.442695
  %v1623 = vpow.pop %v1622
  %v1624 = vmul.f32 %v1619, 1.442695
  %v1625 = vpow.pop %v1624
  %v1626 = vadd.f32 %v1621, 1.0
  %v1627 = vadd.f32 %v1623, 1.0
  %v1628 = vadd.f32 %v1625, 1.0
  %v1629 = vrcp.pop %v1626
  %v1630 = vmul.f32 1.0, %v1629
  %v1631 = vrcp.pop %v1627
  %v1632 = vmul.f32 1.0, %v1631
  %v1633 = vrcp.pop %v1628
  %v1634 = vmul.f32 1.0, %v1633
  %v1635 = vtanh.pop %v1614
  %v1636 = vtanh.pop %v1615
  %v1637 = vtanh.pop %v1616
  %v1638 = vmul.f32 %v1630, %v1495
  %v1639 = vmul.f32 %v1632, %v1496
  %v1640 = vmul.f32 %v1634, %v1497
  %1644 = vrot.lane.b32.xlu0 %v1635, 118
  %v1645 = vpop.permute.xlu0 %1644
  %1646 = vrot.lane.b32.xlu0 %v1636, 118
  %v1647 = vpop.permute.xlu0 %1646
  %1648 = vrot.lane.b32.xlu0 %v1637, 118
  %v1649 = vpop.permute.xlu0 %1648
  %v1653 = vmul.f32 %v1630, %v1645
  %v1654 = vmul.f32 %v1632, %v1647
  %v1655 = vmul.f32 %v1634, %v1649
  %1659 = vrot.lane.b32.xlu0 %v1653, 5
  %v1660 = vpop.permute.xlu0 %1659
  %1661 = vrot.lane.b32.xlu0 %v1654, 5
  %v1662 = vpop.permute.xlu0 %1661
  %1663 = vrot.lane.b32.xlu0 %v1655, 5
  %v1664 = vpop.permute.xlu0 %1663
  %v1668 = vadd.f32 %v1638, %v1660
  %v1669 = vadd.f32 %v1639, %v1662
  %v1670 = vadd.f32 %v1640, %v1664
  %v1671 = vtanh.pop %v1668
  %v1672 = vtanh.pop %v1669
  %v1673 = vtanh.pop %v1670
  %1677 = vrot.lane.b32.xlu0 %v1671, 10
  %v1678 = vpop.permute.xlu0 %1677
  %1679 = vrot.lane.b32.xlu0 %v1672, 10
  %v1680 = vpop.permute.xlu0 %1679
  %1681 = vrot.lane.b32.xlu0 %v1673, 10
  %v1682 = vpop.permute.xlu0 %1681
  %v1686 = vmul.f32 %v1630, %v1678
  %v1687 = vmul.f32 %v1632, %v1680
  %v1688 = vmul.f32 %v1634, %v1682
  %1692 = vrot.lane.b32.xlu0 %v1686, 113
  %v1693 = vpop.permute.xlu0 %1692
  %1694 = vrot.lane.b32.xlu0 %v1687, 113
  %v1695 = vpop.permute.xlu0 %1694
  %1696 = vrot.lane.b32.xlu0 %v1688, 113
  %v1697 = vpop.permute.xlu0 %1696
  %v1698 = vsel %vm31, %v1693, 0
  %v1700 = vsel %vm31, %v1695, 0
  %v1702 = vsel %vm31, %v1697, 0
  %1704 = vmatprep.subr.mxu0 0.0
  %1705 = vmatpush1.msra.mxu0 %v1532
  %1706 = vmatprep.subr.mxu0 0.0
  %1707 = vmatpush1.msra.mxu0 0.0
  %1708 = vmatprep.subr.mxu0 0.0
  %1709 = vmatpush1.msra.mxu0 0.0
  %1710 = vmatprep.subr.mxu0 0.0
  %1711 = vmatpush1.msra.mxu0 0.0
  %1712 = vmatprep.subr.mxu0 0.0
  %1713 = vmatpush1.msra.mxu0 0.0
  %1714 = vmatprep.subr.mxu0 0.0
  %1715 = vmatpush1.msra.mxu0 0.0
  %1716 = vmatprep.subr.mxu0 0.0
  %1717 = vmatpush1.msra.mxu0 0.0
  %1718 = vmatprep.subr.mxu0 0.0
  %1719 = vmatpush1.msra.mxu0 0.0
  %1720 = vmatprep.subr.mxu0 0.0
  %1721 = vmatpush1.msra.mxu0 0.0
  %1722 = vmatprep.subr.mxu0 0.0
  %1723 = vmatpush1.msra.mxu0 0.0
  %1724 = vmatprep.subr.mxu0 0.0
  %1725 = vmatpush1.msra.mxu0 0.0
  %1726 = vmatprep.subr.mxu0 0.0
  %1727 = vmatpush1.msra.mxu0 0.0
  %1728 = vmatprep.subr.mxu0 0.0
  %1729 = vmatpush1.msra.mxu0 0.0
  %1730 = vmatprep.subr.mxu0 0.0
  %1731 = vmatpush1.msra.mxu0 0.0
  %1732 = vmatprep.subr.mxu0 0.0
  %1733 = vmatpush1.msra.mxu0 0.0
  %1734 = vmatprep.subr.mxu0 0.0
  %1735 = vmatpush1.msra.mxu0 0.0
  %1736 = vmatprep.subr.mxu0 0.0
  %1737 = vmatpush1.msra.mxu0 0.0
  %1738 = vmatprep.subr.mxu0 0.0
  %1739 = vmatpush1.msra.mxu0 0.0
  %1740 = vmatprep.subr.mxu0 0.0
  %1741 = vmatpush1.msra.mxu0 0.0
  %1742 = vmatprep.subr.mxu0 0.0
  %1743 = vmatpush1.msra.mxu0 0.0
  %1744 = vmatprep.subr.mxu0 0.0
  %1745 = vmatpush1.msra.mxu0 0.0
  %1746 = vmatprep.subr.mxu0 0.0
  %1747 = vmatpush1.msra.mxu0 0.0
  %1748 = vmatprep.subr.mxu0 0.0
  %1749 = vmatpush1.msra.mxu0 0.0
  %1750 = vmatprep.subr.mxu0 0.0
  %1751 = vmatpush1.msra.mxu0 0.0
  %1752 = vmatprep.subr.mxu0 0.0
  %1753 = vmatpush1.msra.mxu0 0.0
  %1754 = vmatprep.subr.mxu0 0.0
  %1755 = vmatpush1.msra.mxu0 0.0
  %1756 = vmatprep.subr.mxu0 0.0
  %1757 = vmatpush1.msra.mxu0 0.0
  %1758 = vmatprep.subr.mxu0 0.0
  %1759 = vmatpush1.msra.mxu0 0.0
  %1760 = vmatprep.subr.mxu0 0.0
  %1761 = vmatpush1.msra.mxu0 0.0
  %1762 = vmatprep.subr.mxu0 0.0
  %1763 = vmatpush1.msra.mxu0 0.0
  %1764 = vmatprep.subr.mxu0 0.0
  %1765 = vmatpush1.msra.mxu0 0.0
  %1766 = vmatprep.subr.mxu0 0.0
  %1767 = vmatpush1.msra.mxu0 0.0
  %1768 = vmatprep.mubr.f32.mxu0 0.0
  %1769 = vmatmul.mubr.f32.gmra.mrb[0].mxu0 %v1698
  %v1770 = vpop.f32.mrb[0].mxu0
  %v1771 = vadd.f32 0.0, %v1770
  %v1772 = vpop.f32.mrb[0].mxu0
  %1773 = vmatprep.mubr.f32.mxu0 0.0
  %1774 = vmatmul.mubr.f32.gmra.mrb[0].mxu0 %v1700
  %v1775 = vpop.f32.mrb[0].mxu0
  %v1776 = vadd.f32 0.0, %v1775
  %v1777 = vpop.f32.mrb[0].mxu0
  %1778 = vmatprep.mubr.f32.mxu0 0.0
  %1779 = vmatmul.mubr.f32.gmra.mrb[0].mxu0 %v1702
  %v1780 = vpop.f32.mrb[0].mxu0
  %v1781 = vadd.f32 0.0, %v1780
  %v1782 = vpop.f32.mrb[0].mxu0
  %1783 = vdwg.mxu0
  %v1784 = vadd.f32 %v1416, %v1771
  %v1785 = vadd.f32 %v1421, %v1776
  %v1786 = vadd.f32 %v1426, %v1781
  %v1787 = vxor.u32 %v1784, 2147483648
  %v1788 = vxor.u32 %v1785, 2147483648
  %v1789 = vxor.u32 %v1786, 2147483648
  %v1790 = vmul.f32 %v1787, 1.442695
  %v1791 = vpow.pop %v1790
  %v1792 = vmul.f32 %v1788, 1.442695
  %v1793 = vpow.pop %v1792
  %v1794 = vmul.f32 %v1789, 1.442695
  %v1795 = vpow.pop %v1794
  %v1796 = vadd.f32 %v1791, 1.0
  %v1797 = vadd.f32 %v1793, 1.0
  %v1798 = vadd.f32 %v1795, 1.0
  %v1799 = vrcp.pop %v1796
  %v1800 = vmul.f32 1.0, %v1799
  %v1801 = vrcp.pop %v1797
  %v1802 = vmul.f32 1.0, %v1801
  %v1803 = vrcp.pop %v1798
  %v1804 = vmul.f32 1.0, %v1803
  %v1805 = vtanh.pop %v1784
  %v1806 = vtanh.pop %v1785
  %v1807 = vtanh.pop %v1786
  %v1808 = vmul.f32 %v1800, %v1668
  %v1809 = vmul.f32 %v1802, %v1669
  %v1810 = vmul.f32 %v1804, %v1670
  %1814 = vrot.lane.b32.xlu0 %v1805, 118
  %v1815 = vpop.permute.xlu0 %1814
  %1816 = vrot.lane.b32.xlu0 %v1806, 118
  %v1817 = vpop.permute.xlu0 %1816
  %1818 = vrot.lane.b32.xlu0 %v1807, 118
  %v1819 = vpop.permute.xlu0 %1818
  %v1823 = vmul.f32 %v1800, %v1815
  %v1824 = vmul.f32 %v1802, %v1817
  %v1825 = vmul.f32 %v1804, %v1819
  %1829 = vrot.lane.b32.xlu0 %v1823, 5
  %v1830 = vpop.permute.xlu0 %1829
  %1831 = vrot.lane.b32.xlu0 %v1824, 5
  %v1832 = vpop.permute.xlu0 %1831
  %1833 = vrot.lane.b32.xlu0 %v1825, 5
  %v1834 = vpop.permute.xlu0 %1833
  %v1838 = vadd.f32 %v1808, %v1830
  %v1839 = vadd.f32 %v1809, %v1832
  %v1840 = vadd.f32 %v1810, %v1834
  %v1841 = vtanh.pop %v1838
  %v1842 = vtanh.pop %v1839
  %v1843 = vtanh.pop %v1840
  %1847 = vrot.lane.b32.xlu0 %v1841, 10
  %v1848 = vpop.permute.xlu0 %1847
  %1849 = vrot.lane.b32.xlu0 %v1842, 10
  %v1850 = vpop.permute.xlu0 %1849
  %1851 = vrot.lane.b32.xlu0 %v1843, 10
  %v1852 = vpop.permute.xlu0 %1851
  %v1856 = vmul.f32 %v1800, %v1848
  %v1857 = vmul.f32 %v1802, %v1850
  %v1858 = vmul.f32 %v1804, %v1852
  %1862 = vrot.lane.b32.xlu0 %v1856, 113
  %v1863 = vpop.permute.xlu0 %1862
  %1864 = vrot.lane.b32.xlu0 %v1857, 113
  %v1865 = vpop.permute.xlu0 %1864
  %1866 = vrot.lane.b32.xlu0 %v1858, 113
  %v1867 = vpop.permute.xlu0 %1866
  %v1868 = vsel %vm31, %v1863, 0
  %v1870 = vsel %vm31, %v1865, 0
  %v1872 = vsel %vm31, %v1867, 0
  %1874 = vmatprep.subr.mxu0 0.0
  %1875 = vmatpush1.msra.mxu0 %v1532
  %1876 = vmatprep.subr.mxu0 0.0
  %1877 = vmatpush1.msra.mxu0 0.0
  %1878 = vmatprep.subr.mxu0 0.0
  %1879 = vmatpush1.msra.mxu0 0.0
  %1880 = vmatprep.subr.mxu0 0.0
  %1881 = vmatpush1.msra.mxu0 0.0
  %1882 = vmatprep.subr.mxu0 0.0
  %1883 = vmatpush1.msra.mxu0 0.0
  %1884 = vmatprep.subr.mxu0 0.0
  %1885 = vmatpush1.msra.mxu0 0.0
  %1886 = vmatprep.subr.mxu0 0.0
  %1887 = vmatpush1.msra.mxu0 0.0
  %1888 = vmatprep.subr.mxu0 0.0
  %1889 = vmatpush1.msra.mxu0 0.0
  %1890 = vmatprep.subr.mxu0 0.0
  %1891 = vmatpush1.msra.mxu0 0.0
  %1892 = vmatprep.subr.mxu0 0.0
  %1893 = vmatpush1.msra.mxu0 0.0
  %1894 = vmatprep.subr.mxu0 0.0
  %1895 = vmatpush1.msra.mxu0 0.0
  %1896 = vmatprep.subr.mxu0 0.0
  %1897 = vmatpush1.msra.mxu0 0.0
  %1898 = vmatprep.subr.mxu0 0.0
  %1899 = vmatpush1.msra.mxu0 0.0
  %1900 = vmatprep.subr.mxu0 0.0
  %1901 = vmatpush1.msra.mxu0 0.0
  %1902 = vmatprep.subr.mxu0 0.0
  %1903 = vmatpush1.msra.mxu0 0.0
  %1904 = vmatprep.subr.mxu0 0.0
  %1905 = vmatpush1.msra.mxu0 0.0
  %1906 = vmatprep.subr.mxu0 0.0
  %1907 = vmatpush1.msra.mxu0 0.0
  %1908 = vmatprep.subr.mxu0 0.0
  %1909 = vmatpush1.msra.mxu0 0.0
  %1910 = vmatprep.subr.mxu0 0.0
  %1911 = vmatpush1.msra.mxu0 0.0
  %1912 = vmatprep.subr.mxu0 0.0
  %1913 = vmatpush1.msra.mxu0 0.0
  %1914 = vmatprep.subr.mxu0 0.0
  %1915 = vmatpush1.msra.mxu0 0.0
  %1916 = vmatprep.subr.mxu0 0.0
  %1917 = vmatpush1.msra.mxu0 0.0
  %1918 = vmatprep.subr.mxu0 0.0
  %1919 = vmatpush1.msra.mxu0 0.0
  %1920 = vmatprep.subr.mxu0 0.0
  %1921 = vmatpush1.msra.mxu0 0.0
  %1922 = vmatprep.subr.mxu0 0.0
  %1923 = vmatpush1.msra.mxu0 0.0
  %1924 = vmatprep.subr.mxu0 0.0
  %1925 = vmatpush1.msra.mxu0 0.0
  %1926 = vmatprep.subr.mxu0 0.0
  %1927 = vmatpush1.msra.mxu0 0.0
  %1928 = vmatprep.subr.mxu0 0.0
  %1929 = vmatpush1.msra.mxu0 0.0
  %1930 = vmatprep.subr.mxu0 0.0
  %1931 = vmatpush1.msra.mxu0 0.0
  %1932 = vmatprep.subr.mxu0 0.0
  %1933 = vmatpush1.msra.mxu0 0.0
  %1934 = vmatprep.subr.mxu0 0.0
  %1935 = vmatpush1.msra.mxu0 0.0
  %1936 = vmatprep.subr.mxu0 0.0
  %1937 = vmatpush1.msra.mxu0 0.0
  %1938 = vmatprep.mubr.f32.mxu0 0.0
  %1939 = vmatmul.mubr.f32.gmra.mrb[0].mxu0 %v1868
  %v1940 = vpop.f32.mrb[0].mxu0
  %v1941 = vadd.f32 0.0, %v1940
  %v1942 = vpop.f32.mrb[0].mxu0
  %1943 = vmatprep.mubr.f32.mxu0 0.0
  %1944 = vmatmul.mubr.f32.gmra.mrb[0].mxu0 %v1870
  %v1945 = vpop.f32.mrb[0].mxu0
  %v1946 = vadd.f32 0.0, %v1945
  %v1947 = vpop.f32.mrb[0].mxu0
  %1948 = vmatprep.mubr.f32.mxu0 0.0
  %1949 = vmatmul.mubr.f32.gmra.mrb[0].mxu0 %v1872
  %v1950 = vpop.f32.mrb[0].mxu0
  %v1951 = vadd.f32 0.0, %v1950
  %v1952 = vpop.f32.mrb[0].mxu0
  %1953 = vdwg.mxu0
  %v1954 = vadd.f32 %v1431, %v1941
  %v1955 = vadd.f32 %v1436, %v1946
  %v1956 = vadd.f32 %v1441, %v1951
  %v1957 = vxor.u32 %v1954, 2147483648
  %v1958 = vxor.u32 %v1955, 2147483648
  %v1959 = vxor.u32 %v1956, 2147483648
  %v1960 = vmul.f32 %v1957, 1.442695
  %v1961 = vpow.pop %v1960
  %v1962 = vmul.f32 %v1958, 1.442695
  %v1963 = vpow.pop %v1962
  %v1964 = vmul.f32 %v1959, 1.442695
  %v1965 = vpow.pop %v1964
  %v1966 = vadd.f32 %v1961, 1.0
  %v1967 = vadd.f32 %v1963, 1.0
  %v1968 = vadd.f32 %v1965, 1.0
  %v1969 = vrcp.pop %v1966
  %v1970 = vmul.f32 1.0, %v1969
  %v1971 = vrcp.pop %v1967
  %v1972 = vmul.f32 1.0, %v1971
  %v1973 = vrcp.pop %v1968
  %v1974 = vmul.f32 1.0, %v1973
  %v1975 = vtanh.pop %v1954
  %v1976 = vtanh.pop %v1955
  %v1977 = vtanh.pop %v1956
  %v1978 = vmul.f32 %v1970, %v1838
  %v1979 = vmul.f32 %v1972, %v1839
  %v1980 = vmul.f32 %v1974, %v1840
  %1984 = vrot.lane.b32.xlu0 %v1975, 118
  %v1985 = vpop.permute.xlu0 %1984
  %1986 = vrot.lane.b32.xlu0 %v1976, 118
  %v1987 = vpop.permute.xlu0 %1986
  %1988 = vrot.lane.b32.xlu0 %v1977, 118
  %v1989 = vpop.permute.xlu0 %1988
  %v1993 = vmul.f32 %v1970, %v1985
  %v1994 = vmul.f32 %v1972, %v1987
  %v1995 = vmul.f32 %v1974, %v1989
  %1999 = vrot.lane.b32.xlu0 %v1993, 5
  %v2000 = vpop.permute.xlu0 %1999
  %2001 = vrot.lane.b32.xlu0 %v1994, 5
  %v2002 = vpop.permute.xlu0 %2001
  %2003 = vrot.lane.b32.xlu0 %v1995, 5
  %v2004 = vpop.permute.xlu0 %2003
  %v2008 = vadd.f32 %v1978, %v2000
  %v2009 = vadd.f32 %v1979, %v2002
  %v2010 = vadd.f32 %v1980, %v2004
  %2014 = vrot.lane.b32.xlu0 %v2008, 123
  %v2015 = vpop.permute.xlu0 %2014
  %2016 = vrot.lane.b32.xlu0 %v2009, 123
  %v2017 = vpop.permute.xlu0 %2016
  %2018 = vrot.lane.b32.xlu0 %v2010, 123
  %v2019 = vpop.permute.xlu0 %2018
  %2023 = vst.msk [vmem:[%s3] sm:$0xff] %vm31, %v2015
  %2024 = vst.msk [vmem:[%s3 + $0x8] sm:$0xff] %vm31, %v2017
  %2025 = vst.msk [vmem:[%s3 + $0x10] sm:$0xff] %vm31, %v2019
  // Predicated region
  $region14: #{agg_lstm_forward.1} parent=0 // pred_check
    _
  $region15: #{agg_lstm_forward.1} parent=0 // pred_check_branch
    %2027 = sbr.rel (0) target = $region17
  $region16: #{agg_lstm_forward.1} parent=0 // pred_region
    _
  $region17: #{agg_lstm_forward.1} parent=0 // pred_fallthru
    _
  // Predicated region
  $region18: #{agg_lstm_forward.1} parent=0 // pred_check
    _
  $region19: #{agg_lstm_forward.1} parent=0 // pred_check_branch
    %2029 = sbr.rel (0) target = $region21
  $region20: #{agg_lstm_forward.1} parent=0 // pred_region
    _
  $region21: #{agg_lstm_forward.1} parent=0 // pred_fallthru
    _

</llo_original>
